<compile_context>
chip_gen: v7x
topology: tpu7x:2x2x1
jax: 0.10.0
libtpu: 0.0.40
codegen_flags: <defaults>
</compile_context>

<pallas_src>
import jax
import jax.numpy as jnp
from jax.experimental import pallas as pl
from jax.experimental.pallas import tpu as pltpu

H = 16            # hidden width of each correction MLP
NUM_LAYERS = 5    # validity_net.number_layer
LANES = 128       # TPU lane width
VREG_N = 1024     # pad node count to a multiple of 8*128 => full (8,128) vregs
NUM_ACC = 4       # partial accumulators in the unrolled MLP (VALU ILP)


def make_validity_kernel(alpha: float, tau: float, rho: float, n: int):
    """Build the Pallas kernel body (alpha/tau/rho/n are static)."""
    inv_n = 1.0 / float(n)            # 1 / label.shape[0]  (original N, not padded)
    inv_ta = 1.0 / (tau + alpha)      # 1 / (tau_i + alpha_i)
    n_f = float(n)

    def kernel(x_ref, label_ref, mask_ref,
               w1_ref, b1_ref, w2t_ref, b2t_ref, scal_ref, out_ref):
        x_in = x_ref[...]             # (R, 128)  original prediction, lane-dense
        lbl = label_ref[...]          # (R, 128)  source label (0/1), zero-padded
        msk = mask_ref[...]           # (R, 128)  1.0 on valid nodes, 0.0 on padding

        lam = scal_ref[0]             # lagrange multiplier (SMEM scalar)
        s = scal_ref[1]               # sum(label), precomputed in the wrapper

        # hoisted loop invariants: label * softmax / N  ->  (l?s) * sm?
        l0s = (1.0 - lbl) * inv_n
        l1s = lbl * inv_n

        # label = cat(1-label, label); x = cat(1-x, x)  -> two dense slabs each
        x0 = 1.0 - x_in
        x1 = x_in

        # Before the first update, x0 + x1 == 1 on every valid lane, so the
        # layer-0 global sum is exactly n — no reduction, no reduce->broadcast
        # dependency gating layer 0.
        total = n_f

        for i in range(NUM_LAYERS):
            prob = x1                                         # x[:, 1]
            base_idx = i * H

            # correction net_i(prob): relu(prob*W1 + b1) @ (tau*W2) + tau*b2,
            # unrolled as scalar-broadcast FMAs from SMEM; tau*b2 folded into
            # the scalar term `c` below.  NUM_ACC partial accumulators.
            per = (H + NUM_ACC - 1) // NUM_ACC
            parts = []
            for g in range(NUM_ACC):
                lo = g * per
                hi = min(H, lo + per)
                if lo >= hi:
                    continue
                h0 = base_idx + lo
                a = w2t_ref[h0] * jnp.maximum(w1_ref[h0] * prob + b1_ref[h0], 0.0)
                for hh in range(h0 + 1, base_idx + hi):
                    a = a + w2t_ref[hh] * jnp.maximum(
                        w1_ref[hh] * prob + b1_ref[hh], 0.0)
                parts.append(a)
            while len(parts) > 1:                             # tree combine
                nxt = [parts[j] + parts[j + 1] for j in range(0, len(parts) - 1, 2)]
                if len(parts) % 2:
                    nxt.append(parts[-1])
                parts = nxt
            acc = parts[0]                                    # tau * (W2 @ relu(...))

            # softmax(x, dim=1) over the 2-class dim == stable sigmoid(x1-x0);
            # the reciprocal runs on the EUP alongside the exp.
            z = x1 - x0
            ez = jnp.exp(-jnp.abs(z))
            inv = pl.reciprocal(1.0 + ez, approx=True)
            sm1 = jnp.where(z >= 0.0, inv, ez * inv)
            sm0 = 1.0 - sm1

            # lamda + rho * (torch.sum(x) - sum)   (all scalar)
            pen = lam + rho * (total - s)
            c = b2t_ref[i] - pen                              # tau*b2_i - pen
            base = acc + c                                    # (R, 128)

            x0 = (base - l0s * sm0 + alpha * x0) * inv_ta
            x1 = (base - l1s * sm1 + alpha * x1) * inv_ta

            if i < NUM_LAYERS - 1:
                # Fused end-of-layer reductions while x0/x1 are hot in vregs:
                # sum1 feeds the lam update, sum0+sum1 is next layer's total.
                sum0 = jnp.sum(x0 * msk)
                sum1 = jnp.sum(x1 * msk)
                lam = lam + rho * (sum1 - s)
                total = sum0 + sum1

        # dense, unmasked full-slab stores (lane-dense output)
        out_ref[0] = x0
        out_ref[1] = x1

    return kernel


def validity_net_forward(x, label, lamda, w1, b1, w2, b2, alpha, tau, rho):
    """x:(N,1), label:(N,1), lamda: scalar -> returns (N,2) like the PyTorch module."""
    n = x.shape[0]
    n_pad = ((n + VREG_N - 1) // VREG_N) * VREG_N
    r = n_pad // LANES

    def pad_rows(v):
        flat = jnp.asarray(v, jnp.float32).reshape(n)
        return jnp.zeros((n_pad,), jnp.float32).at[:n].set(flat).reshape(r, LANES)

    x_blk = pad_rows(x)
    label_blk = pad_rows(label)
    mask_blk = (jnp.arange(n_pad) < n).astype(jnp.float32).reshape(r, LANES)

    # Flat 1-D, layer-major SMEM weight tables (trims SMEM padding waste);
    # tau folded into the output-layer weights / bias.
    w1f = jnp.asarray(w1, jnp.float32).T.reshape(-1)                       # (5*H,)
    b1f = jnp.asarray(b1, jnp.float32).T.reshape(-1)                       # (5*H,)
    w2tf = (float(tau) * jnp.asarray(w2, jnp.float32)).T.reshape(-1)       # (5*H,)
    b2tf = (float(tau) * jnp.asarray(b2, jnp.float32)).reshape(-1)         # (5,)

    # lamda and sum(label) as SMEM scalars (no in-kernel label reduction).
    scal = jnp.stack([jnp.asarray(lamda, jnp.float32).reshape(()),
                      jnp.sum(jnp.asarray(label, jnp.float32))])

    kernel = make_validity_kernel(float(alpha), float(tau), float(rho), n)

    # Explicit VMEM budget: ~14 live f32 slabs of padded nodes + headroom,
    # floored at the usual 32 MiB scoped default and capped at v7x's 64 MiB.
    slab_bytes = 4 * n_pad
    vmem_need = 14 * slab_bytes + (1 << 20)
    vmem_limit = int(min(max(vmem_need, 32 << 20), 64 << 20))

    out = pl.pallas_call(
        kernel,
        out_shape=jax.ShapeDtypeStruct((2, r, LANES), jnp.float32),
        in_specs=[
            pl.BlockSpec(memory_space=pltpu.MemorySpace.VMEM),   # x     (R,128)
            pl.BlockSpec(memory_space=pltpu.MemorySpace.VMEM),   # label (R,128)
            pl.BlockSpec(memory_space=pltpu.MemorySpace.VMEM),   # valid-lane mask
            pl.BlockSpec(memory_space=pltpu.MemorySpace.SMEM),   # fc1 weights (5H,)
            pl.BlockSpec(memory_space=pltpu.MemorySpace.SMEM),   # fc1 biases  (5H,)
            pl.BlockSpec(memory_space=pltpu.MemorySpace.SMEM),   # tau*fc2 wts (5H,)
            pl.BlockSpec(memory_space=pltpu.MemorySpace.SMEM),   # tau*fc2 bias (5,)
            pl.BlockSpec(memory_space=pltpu.MemorySpace.SMEM),   # [lamda, sum(label)]
        ],
        out_specs=pl.BlockSpec(memory_space=pltpu.MemorySpace.VMEM),
        compiler_params=pltpu.CompilerParams(vmem_limit_bytes=vmem_limit),
        cost_estimate=pl.CostEstimate(
            flops=NUM_LAYERS * 100 * n_pad,
            transcendentals=2 * NUM_LAYERS * n_pad,
            bytes_accessed=28 * n_pad),
    )(x_blk, label_blk, mask_blk, w1f, b1f, w2tf, b2tf, scal)

    # Back to the PyTorch (N, 2) convention (downstream consumers could keep
    # the lane-dense (2, n_pad) layout instead).
    out_2n = out.reshape(2, n_pad)[:, :n]
    return out_2n.T


def reference_forward(x, label, lamda, w1, b1, w2, b2, alpha, tau, rho):
    """Pure-JAX reference mirroring the PyTorch code line by line."""
    s = jnp.sum(label)
    label2 = jnp.concatenate([1.0 - label, label], axis=1)   # (N, 2)
    x2 = jnp.concatenate([1.0 - x, x], axis=1)               # (N, 2)
    n = label2.shape[0]
    lam = lamda

    def net(i, p):  # p: (N,1)
        h = jnp.maximum(p * w1[:, i][None, :] + b1[:, i][None, :], 0.0)  # (N,H)
        return h @ w2[:, i:i + 1] + b2[0, i]                             # (N,1)

    for i in range(NUM_LAYERS):
        prob = x2[:, 1:2]
        nt = net(i, prob)
        sm = jax.nn.softmax(x2, axis=1)
        x2 = (tau * nt - label2 * sm / n - lam
              - rho * (jnp.sum(x2) - s) + alpha * x2) / (tau + alpha)
        if i < NUM_LAYERS - 1:
            lam = lam + rho * (jnp.sum(x2[:, 1:2]) - s)
    return x2


if __name__ == "__main__":
    N = 200                       # deliberately not a multiple of 128: exercises masking
    alpha, tau, rho = 1.0, 1.0, 1e-3

    key = jax.random.PRNGKey(0)
    k1, k2, k3, k4, k5, k6 = jax.random.split(key, 6)

    x = jax.random.uniform(k1, (N, 1), jnp.float32)                       # seed-vector prediction
    label = (jax.random.uniform(k2, (N, 1)) > 0.9).astype(jnp.float32)    # source labels
    lamda = jnp.float32(0.05)                                             # lagrange multiplier

    # Deterministic correction-MLP params for net1..net5 (column i = net_i).
    w1 = 0.1 * jax.random.normal(k3, (H, NUM_LAYERS), jnp.float32)  # fc1.weight (H,1) flattened
    b1 = 0.1 * jax.random.normal(k4, (H, NUM_LAYERS), jnp.float32)  # fc1.bias
    w2 = 0.1 * jax.random.normal(k5, (H, NUM_LAYERS), jnp.float32)  # fc2.weight (1,H) flattened
    b2 = 0.1 * jax.random.normal(k6, (1, NUM_LAYERS), jnp.float32)  # fc2.bias

    out = validity_net_forward(x, label, lamda, w1, b1, w2, b2, alpha, tau, rho)
    out = jax.block_until_ready(out)

    ref = reference_forward(x, label, lamda, w1, b1, w2, b2, alpha, tau, rho)

    assert out.shape == (N, 2), out.shape
    # Tolerance accounts for pl.reciprocal(approx=True) in the sigmoid (its
    # relative error is further attenuated by the 1/N scaling of that term).
    err = float(jnp.max(jnp.abs(out - ref)))
    assert jnp.allclose(out, ref, atol=1e-4, rtol=1e-4), err
    print("KERNEL_OK")
</pallas_src>

<mosaic_0001>
module attributes {stable_mosaic.version = 11 : i64} {
  func.func @kernel(%arg0: memref<8x128xf32, #tpu.memory_space<vmem>>, %arg1: memref<8x128xf32, #tpu.memory_space<vmem>>, %arg2: memref<8x128xf32, #tpu.memory_space<vmem>>, %arg3: memref<80xf32, #tpu.memory_space<smem>>, %arg4: memref<80xf32, #tpu.memory_space<smem>>, %arg5: memref<80xf32, #tpu.memory_space<smem>>, %arg6: memref<5xf32, #tpu.memory_space<smem>>, %arg7: memref<2xf32, #tpu.memory_space<smem>>, %arg8: memref<2x8x128xf32, #tpu.memory_space<vmem>>) attributes {dimension_semantics = [], scalar_prefetch = 0 : i64, scratch_operands = 0 : i64, tpu.core_type = #tpu.core_type<tc>} {
    %c0 = arith.constant 0 : index
    %c0_0 = arith.constant 0 : index
    %0 = vector.load %arg0[%c0, %c0_0] : memref<8x128xf32, #tpu.memory_space<vmem>>, vector<8x128xf32>
    %c0_1 = arith.constant 0 : index
    %c0_2 = arith.constant 0 : index
    %1 = vector.load %arg1[%c0_1, %c0_2] : memref<8x128xf32, #tpu.memory_space<vmem>>, vector<8x128xf32>
    %c0_3 = arith.constant 0 : index
    %c0_4 = arith.constant 0 : index
    %2 = vector.load %arg2[%c0_3, %c0_4] : memref<8x128xf32, #tpu.memory_space<vmem>>, vector<8x128xf32>
    %c0_5 = arith.constant 0 : index
    %3 = memref.load %arg7[%c0_5] : memref<2xf32, #tpu.memory_space<smem>>
    %c1 = arith.constant 1 : index
    %4 = memref.load %arg7[%c1] : memref<2xf32, #tpu.memory_space<smem>>
    %cst = arith.constant 1.000000e+00 : f32
    %5 = vector.broadcast %cst : f32 to vector<8x128xf32>
    %6 = arith.subf %5, %1 : vector<8x128xf32>
    %cst_6 = arith.constant 5.000000e-03 : f32
    %7 = vector.broadcast %cst_6 : f32 to vector<8x128xf32>
    %8 = arith.mulf %6, %7 : vector<8x128xf32>
    %cst_7 = arith.constant 5.000000e-03 : f32
    %9 = vector.broadcast %cst_7 : f32 to vector<8x128xf32>
    %10 = arith.mulf %1, %9 : vector<8x128xf32>
    %cst_8 = arith.constant 1.000000e+00 : f32
    %11 = vector.broadcast %cst_8 : f32 to vector<8x128xf32>
    %12 = arith.subf %11, %0 : vector<8x128xf32>
    %c0_9 = arith.constant 0 : index
    %13 = memref.load %arg5[%c0_9] : memref<80xf32, #tpu.memory_space<smem>>
    %c0_10 = arith.constant 0 : index
    %14 = memref.load %arg3[%c0_10] : memref<80xf32, #tpu.memory_space<smem>>
    %15 = vector.broadcast %14 : f32 to vector<8x128xf32>
    %16 = arith.mulf %15, %0 : vector<8x128xf32>
    %c0_11 = arith.constant 0 : index
    %17 = memref.load %arg4[%c0_11] : memref<80xf32, #tpu.memory_space<smem>>
    %18 = vector.broadcast %17 : f32 to vector<8x128xf32>
    %19 = arith.addf %16, %18 : vector<8x128xf32>
    %cst_12 = arith.constant 0.000000e+00 : f32
    %20 = vector.broadcast %cst_12 : f32 to vector<8x128xf32>
    %21 = arith.maximumf %19, %20 : vector<8x128xf32>
    %22 = vector.broadcast %13 : f32 to vector<8x128xf32>
    %23 = arith.mulf %22, %21 : vector<8x128xf32>
    %c1_13 = arith.constant 1 : index
    %24 = memref.load %arg5[%c1_13] : memref<80xf32, #tpu.memory_space<smem>>
    %c1_14 = arith.constant 1 : index
    %25 = memref.load %arg3[%c1_14] : memref<80xf32, #tpu.memory_space<smem>>
    %26 = vector.broadcast %25 : f32 to vector<8x128xf32>
    %27 = arith.mulf %26, %0 : vector<8x128xf32>
    %c1_15 = arith.constant 1 : index
    %28 = memref.load %arg4[%c1_15] : memref<80xf32, #tpu.memory_space<smem>>
    %29 = vector.broadcast %28 : f32 to vector<8x128xf32>
    %30 = arith.addf %27, %29 : vector<8x128xf32>
    %cst_16 = arith.constant 0.000000e+00 : f32
    %31 = vector.broadcast %cst_16 : f32 to vector<8x128xf32>
    %32 = arith.maximumf %30, %31 : vector<8x128xf32>
    %33 = vector.broadcast %24 : f32 to vector<8x128xf32>
    %34 = arith.mulf %33, %32 : vector<8x128xf32>
    %35 = arith.addf %23, %34 : vector<8x128xf32>
    %c2 = arith.constant 2 : index
    %36 = memref.load %arg5[%c2] : memref<80xf32, #tpu.memory_space<smem>>
    %c2_17 = arith.constant 2 : index
    %37 = memref.load %arg3[%c2_17] : memref<80xf32, #tpu.memory_space<smem>>
    %38 = vector.broadcast %37 : f32 to vector<8x128xf32>
    %39 = arith.mulf %38, %0 : vector<8x128xf32>
    %c2_18 = arith.constant 2 : index
    %40 = memref.load %arg4[%c2_18] : memref<80xf32, #tpu.memory_space<smem>>
    %41 = vector.broadcast %40 : f32 to vector<8x128xf32>
    %42 = arith.addf %39, %41 : vector<8x128xf32>
    %cst_19 = arith.constant 0.000000e+00 : f32
    %43 = vector.broadcast %cst_19 : f32 to vector<8x128xf32>
    %44 = arith.maximumf %42, %43 : vector<8x128xf32>
    %45 = vector.broadcast %36 : f32 to vector<8x128xf32>
    %46 = arith.mulf %45, %44 : vector<8x128xf32>
    %47 = arith.addf %35, %46 : vector<8x128xf32>
    %c3 = arith.constant 3 : index
    %48 = memref.load %arg5[%c3] : memref<80xf32, #tpu.memory_space<smem>>
    %c3_20 = arith.constant 3 : index
    %49 = memref.load %arg3[%c3_20] : memref<80xf32, #tpu.memory_space<smem>>
    %50 = vector.broadcast %49 : f32 to vector<8x128xf32>
    %51 = arith.mulf %50, %0 : vector<8x128xf32>
    %c3_21 = arith.constant 3 : index
    %52 = memref.load %arg4[%c3_21] : memref<80xf32, #tpu.memory_space<smem>>
    %53 = vector.broadcast %52 : f32 to vector<8x128xf32>
    %54 = arith.addf %51, %53 : vector<8x128xf32>
    %cst_22 = arith.constant 0.000000e+00 : f32
    %55 = vector.broadcast %cst_22 : f32 to vector<8x128xf32>
    %56 = arith.maximumf %54, %55 : vector<8x128xf32>
    %57 = vector.broadcast %48 : f32 to vector<8x128xf32>
    %58 = arith.mulf %57, %56 : vector<8x128xf32>
    %59 = arith.addf %47, %58 : vector<8x128xf32>
    %c4 = arith.constant 4 : index
    %60 = memref.load %arg5[%c4] : memref<80xf32, #tpu.memory_space<smem>>
    %c4_23 = arith.constant 4 : index
    %61 = memref.load %arg3[%c4_23] : memref<80xf32, #tpu.memory_space<smem>>
    %62 = vector.broadcast %61 : f32 to vector<8x128xf32>
    %63 = arith.mulf %62, %0 : vector<8x128xf32>
    %c4_24 = arith.constant 4 : index
    %64 = memref.load %arg4[%c4_24] : memref<80xf32, #tpu.memory_space<smem>>
    %65 = vector.broadcast %64 : f32 to vector<8x128xf32>
    %66 = arith.addf %63, %65 : vector<8x128xf32>
    %cst_25 = arith.constant 0.000000e+00 : f32
    %67 = vector.broadcast %cst_25 : f32 to vector<8x128xf32>
    %68 = arith.maximumf %66, %67 : vector<8x128xf32>
    %69 = vector.broadcast %60 : f32 to vector<8x128xf32>
    %70 = arith.mulf %69, %68 : vector<8x128xf32>
    %c5 = arith.constant 5 : index
    %71 = memref.load %arg5[%c5] : memref<80xf32, #tpu.memory_space<smem>>
    %c5_26 = arith.constant 5 : index
    %72 = memref.load %arg3[%c5_26] : memref<80xf32, #tpu.memory_space<smem>>
    %73 = vector.broadcast %72 : f32 to vector<8x128xf32>
    %74 = arith.mulf %73, %0 : vector<8x128xf32>
    %c5_27 = arith.constant 5 : index
    %75 = memref.load %arg4[%c5_27] : memref<80xf32, #tpu.memory_space<smem>>
    %76 = vector.broadcast %75 : f32 to vector<8x128xf32>
    %77 = arith.addf %74, %76 : vector<8x128xf32>
    %cst_28 = arith.constant 0.000000e+00 : f32
    %78 = vector.broadcast %cst_28 : f32 to vector<8x128xf32>
    %79 = arith.maximumf %77, %78 : vector<8x128xf32>
    %80 = vector.broadcast %71 : f32 to vector<8x128xf32>
    %81 = arith.mulf %80, %79 : vector<8x128xf32>
    %82 = arith.addf %70, %81 : vector<8x128xf32>
    %c6 = arith.constant 6 : index
    %83 = memref.load %arg5[%c6] : memref<80xf32, #tpu.memory_space<smem>>
    %c6_29 = arith.constant 6 : index
    %84 = memref.load %arg3[%c6_29] : memref<80xf32, #tpu.memory_space<smem>>
    %85 = vector.broadcast %84 : f32 to vector<8x128xf32>
    %86 = arith.mulf %85, %0 : vector<8x128xf32>
    %c6_30 = arith.constant 6 : index
    %87 = memref.load %arg4[%c6_30] : memref<80xf32, #tpu.memory_space<smem>>
    %88 = vector.broadcast %87 : f32 to vector<8x128xf32>
    %89 = arith.addf %86, %88 : vector<8x128xf32>
    %cst_31 = arith.constant 0.000000e+00 : f32
    %90 = vector.broadcast %cst_31 : f32 to vector<8x128xf32>
    %91 = arith.maximumf %89, %90 : vector<8x128xf32>
    %92 = vector.broadcast %83 : f32 to vector<8x128xf32>
    %93 = arith.mulf %92, %91 : vector<8x128xf32>
    %94 = arith.addf %82, %93 : vector<8x128xf32>
    %c7 = arith.constant 7 : index
    %95 = memref.load %arg5[%c7] : memref<80xf32, #tpu.memory_space<smem>>
    %c7_32 = arith.constant 7 : index
    %96 = memref.load %arg3[%c7_32] : memref<80xf32, #tpu.memory_space<smem>>
    %97 = vector.broadcast %96 : f32 to vector<8x128xf32>
    %98 = arith.mulf %97, %0 : vector<8x128xf32>
    %c7_33 = arith.constant 7 : index
    %99 = memref.load %arg4[%c7_33] : memref<80xf32, #tpu.memory_space<smem>>
    %100 = vector.broadcast %99 : f32 to vector<8x128xf32>
    %101 = arith.addf %98, %100 : vector<8x128xf32>
    %cst_34 = arith.constant 0.000000e+00 : f32
    %102 = vector.broadcast %cst_34 : f32 to vector<8x128xf32>
    %103 = arith.maximumf %101, %102 : vector<8x128xf32>
    %104 = vector.broadcast %95 : f32 to vector<8x128xf32>
    %105 = arith.mulf %104, %103 : vector<8x128xf32>
    %106 = arith.addf %94, %105 : vector<8x128xf32>
    %c8 = arith.constant 8 : index
    %107 = memref.load %arg5[%c8] : memref<80xf32, #tpu.memory_space<smem>>
    %c8_35 = arith.constant 8 : index
    %108 = memref.load %arg3[%c8_35] : memref<80xf32, #tpu.memory_space<smem>>
    %109 = vector.broadcast %108 : f32 to vector<8x128xf32>
    %110 = arith.mulf %109, %0 : vector<8x128xf32>
    %c8_36 = arith.constant 8 : index
    %111 = memref.load %arg4[%c8_36] : memref<80xf32, #tpu.memory_space<smem>>
    %112 = vector.broadcast %111 : f32 to vector<8x128xf32>
    %113 = arith.addf %110, %112 : vector<8x128xf32>
    %cst_37 = arith.constant 0.000000e+00 : f32
    %114 = vector.broadcast %cst_37 : f32 to vector<8x128xf32>
    %115 = arith.maximumf %113, %114 : vector<8x128xf32>
    %116 = vector.broadcast %107 : f32 to vector<8x128xf32>
    %117 = arith.mulf %116, %115 : vector<8x128xf32>
    %c9 = arith.constant 9 : index
    %118 = memref.load %arg5[%c9] : memref<80xf32, #tpu.memory_space<smem>>
    %c9_38 = arith.constant 9 : index
    %119 = memref.load %arg3[%c9_38] : memref<80xf32, #tpu.memory_space<smem>>
    %120 = vector.broadcast %119 : f32 to vector<8x128xf32>
    %121 = arith.mulf %120, %0 : vector<8x128xf32>
    %c9_39 = arith.constant 9 : index
    %122 = memref.load %arg4[%c9_39] : memref<80xf32, #tpu.memory_space<smem>>
    %123 = vector.broadcast %122 : f32 to vector<8x128xf32>
    %124 = arith.addf %121, %123 : vector<8x128xf32>
    %cst_40 = arith.constant 0.000000e+00 : f32
    %125 = vector.broadcast %cst_40 : f32 to vector<8x128xf32>
    %126 = arith.maximumf %124, %125 : vector<8x128xf32>
    %127 = vector.broadcast %118 : f32 to vector<8x128xf32>
    %128 = arith.mulf %127, %126 : vector<8x128xf32>
    %129 = arith.addf %117, %128 : vector<8x128xf32>
    %c10 = arith.constant 10 : index
    %130 = memref.load %arg5[%c10] : memref<80xf32, #tpu.memory_space<smem>>
    %c10_41 = arith.constant 10 : index
    %131 = memref.load %arg3[%c10_41] : memref<80xf32, #tpu.memory_space<smem>>
    %132 = vector.broadcast %131 : f32 to vector<8x128xf32>
    %133 = arith.mulf %132, %0 : vector<8x128xf32>
    %c10_42 = arith.constant 10 : index
    %134 = memref.load %arg4[%c10_42] : memref<80xf32, #tpu.memory_space<smem>>
    %135 = vector.broadcast %134 : f32 to vector<8x128xf32>
    %136 = arith.addf %133, %135 : vector<8x128xf32>
    %cst_43 = arith.constant 0.000000e+00 : f32
    %137 = vector.broadcast %cst_43 : f32 to vector<8x128xf32>
    %138 = arith.maximumf %136, %137 : vector<8x128xf32>
    %139 = vector.broadcast %130 : f32 to vector<8x128xf32>
    %140 = arith.mulf %139, %138 : vector<8x128xf32>
    %141 = arith.addf %129, %140 : vector<8x128xf32>
    %c11 = arith.constant 11 : index
    %142 = memref.load %arg5[%c11] : memref<80xf32, #tpu.memory_space<smem>>
    %c11_44 = arith.constant 11 : index
    %143 = memref.load %arg3[%c11_44] : memref<80xf32, #tpu.memory_space<smem>>
    %144 = vector.broadcast %143 : f32 to vector<8x128xf32>
    %145 = arith.mulf %144, %0 : vector<8x128xf32>
    %c11_45 = arith.constant 11 : index
    %146 = memref.load %arg4[%c11_45] : memref<80xf32, #tpu.memory_space<smem>>
    %147 = vector.broadcast %146 : f32 to vector<8x128xf32>
    %148 = arith.addf %145, %147 : vector<8x128xf32>
    %cst_46 = arith.constant 0.000000e+00 : f32
    %149 = vector.broadcast %cst_46 : f32 to vector<8x128xf32>
    %150 = arith.maximumf %148, %149 : vector<8x128xf32>
    %151 = vector.broadcast %142 : f32 to vector<8x128xf32>
    %152 = arith.mulf %151, %150 : vector<8x128xf32>
    %153 = arith.addf %141, %152 : vector<8x128xf32>
    %c12 = arith.constant 12 : index
    %154 = memref.load %arg5[%c12] : memref<80xf32, #tpu.memory_space<smem>>
    %c12_47 = arith.constant 12 : index
    %155 = memref.load %arg3[%c12_47] : memref<80xf32, #tpu.memory_space<smem>>
    %156 = vector.broadcast %155 : f32 to vector<8x128xf32>
    %157 = arith.mulf %156, %0 : vector<8x128xf32>
    %c12_48 = arith.constant 12 : index
    %158 = memref.load %arg4[%c12_48] : memref<80xf32, #tpu.memory_space<smem>>
    %159 = vector.broadcast %158 : f32 to vector<8x128xf32>
    %160 = arith.addf %157, %159 : vector<8x128xf32>
    %cst_49 = arith.constant 0.000000e+00 : f32
    %161 = vector.broadcast %cst_49 : f32 to vector<8x128xf32>
    %162 = arith.maximumf %160, %161 : vector<8x128xf32>
    %163 = vector.broadcast %154 : f32 to vector<8x128xf32>
    %164 = arith.mulf %163, %162 : vector<8x128xf32>
    %c13 = arith.constant 13 : index
    %165 = memref.load %arg5[%c13] : memref<80xf32, #tpu.memory_space<smem>>
    %c13_50 = arith.constant 13 : index
    %166 = memref.load %arg3[%c13_50] : memref<80xf32, #tpu.memory_space<smem>>
    %167 = vector.broadcast %166 : f32 to vector<8x128xf32>
    %168 = arith.mulf %167, %0 : vector<8x128xf32>
    %c13_51 = arith.constant 13 : index
    %169 = memref.load %arg4[%c13_51] : memref<80xf32, #tpu.memory_space<smem>>
    %170 = vector.broadcast %169 : f32 to vector<8x128xf32>
    %171 = arith.addf %168, %170 : vector<8x128xf32>
    %cst_52 = arith.constant 0.000000e+00 : f32
    %172 = vector.broadcast %cst_52 : f32 to vector<8x128xf32>
    %173 = arith.maximumf %171, %172 : vector<8x128xf32>
    %174 = vector.broadcast %165 : f32 to vector<8x128xf32>
    %175 = arith.mulf %174, %173 : vector<8x128xf32>
    %176 = arith.addf %164, %175 : vector<8x128xf32>
    %c14 = arith.constant 14 : index
    %177 = memref.load %arg5[%c14] : memref<80xf32, #tpu.memory_space<smem>>
    %c14_53 = arith.constant 14 : index
    %178 = memref.load %arg3[%c14_53] : memref<80xf32, #tpu.memory_space<smem>>
    %179 = vector.broadcast %178 : f32 to vector<8x128xf32>
    %180 = arith.mulf %179, %0 : vector<8x128xf32>
    %c14_54 = arith.constant 14 : index
    %181 = memref.load %arg4[%c14_54] : memref<80xf32, #tpu.memory_space<smem>>
    %182 = vector.broadcast %181 : f32 to vector<8x128xf32>
    %183 = arith.addf %180, %182 : vector<8x128xf32>
    %cst_55 = arith.constant 0.000000e+00 : f32
    %184 = vector.broadcast %cst_55 : f32 to vector<8x128xf32>
    %185 = arith.maximumf %183, %184 : vector<8x128xf32>
    %186 = vector.broadcast %177 : f32 to vector<8x128xf32>
    %187 = arith.mulf %186, %185 : vector<8x128xf32>
    %188 = arith.addf %176, %187 : vector<8x128xf32>
    %c15 = arith.constant 15 : index
    %189 = memref.load %arg5[%c15] : memref<80xf32, #tpu.memory_space<smem>>
    %c15_56 = arith.constant 15 : index
    %190 = memref.load %arg3[%c15_56] : memref<80xf32, #tpu.memory_space<smem>>
    %191 = vector.broadcast %190 : f32 to vector<8x128xf32>
    %192 = arith.mulf %191, %0 : vector<8x128xf32>
    %c15_57 = arith.constant 15 : index
    %193 = memref.load %arg4[%c15_57] : memref<80xf32, #tpu.memory_space<smem>>
    %194 = vector.broadcast %193 : f32 to vector<8x128xf32>
    %195 = arith.addf %192, %194 : vector<8x128xf32>
    %cst_58 = arith.constant 0.000000e+00 : f32
    %196 = vector.broadcast %cst_58 : f32 to vector<8x128xf32>
    %197 = arith.maximumf %195, %196 : vector<8x128xf32>
    %198 = vector.broadcast %189 : f32 to vector<8x128xf32>
    %199 = arith.mulf %198, %197 : vector<8x128xf32>
    %200 = arith.addf %188, %199 : vector<8x128xf32>
    %201 = arith.addf %59, %106 : vector<8x128xf32>
    %202 = arith.addf %153, %200 : vector<8x128xf32>
    %203 = arith.addf %201, %202 : vector<8x128xf32>
    %204 = arith.subf %0, %12 : vector<8x128xf32>
    %205 = math.absf %204 : vector<8x128xf32>
    %cst_59 = arith.constant 0.000000e+00 : f32
    %206 = vector.broadcast %cst_59 : f32 to vector<8x128xf32>
    %207 = arith.subf %206, %205 : vector<8x128xf32>
    %208 = math.exp %207 : vector<8x128xf32>
    %cst_60 = arith.constant 1.000000e+00 : f32
    %209 = vector.broadcast %cst_60 : f32 to vector<8x128xf32>
    %210 = arith.addf %209, %208 : vector<8x128xf32>
    %211 = tpu.reciprocal %210 {approx = true} : vector<8x128xf32> -> vector<8x128xf32>
    %cst_61 = arith.constant 0.000000e+00 : f32
    %212 = vector.broadcast %cst_61 : f32 to vector<8x128xf32>
    %213 = arith.cmpf oge, %204, %212 : vector<8x128xf32>
    %214 = arith.mulf %208, %211 : vector<8x128xf32>
    %215 = arith.select %213, %211, %214 : vector<8x128xi1>, vector<8x128xf32>
    %cst_62 = arith.constant 1.000000e+00 : f32
    %216 = vector.broadcast %cst_62 : f32 to vector<8x128xf32>
    %217 = arith.subf %216, %215 : vector<8x128xf32>
    %cst_63 = arith.constant 2.000000e+02 : f32
    %218 = arith.subf %cst_63, %4 : f32
    %cst_64 = arith.constant 1.000000e-03 : f32
    %219 = arith.mulf %cst_64, %218 : f32
    %220 = arith.addf %3, %219 : f32
    %c0_65 = arith.constant 0 : index
    %221 = memref.load %arg6[%c0_65] : memref<5xf32, #tpu.memory_space<smem>>
    %222 = arith.subf %221, %220 : f32
    %223 = vector.broadcast %222 : f32 to vector<8x128xf32>
    %224 = arith.addf %203, %223 : vector<8x128xf32>
    %225 = arith.mulf %8, %217 : vector<8x128xf32>
    %226 = arith.subf %224, %225 : vector<8x128xf32>
    %cst_66 = arith.constant 1.000000e+00 : f32
    %227 = vector.broadcast %cst_66 : f32 to vector<8x128xf32>
    %228 = arith.mulf %227, %12 : vector<8x128xf32>
    %229 = arith.addf %226, %228 : vector<8x128xf32>
    %cst_67 = arith.constant 5.000000e-01 : f32
    %230 = vector.broadcast %cst_67 : f32 to vector<8x128xf32>
    %231 = arith.mulf %229, %230 : vector<8x128xf32>
    %232 = arith.mulf %10, %215 : vector<8x128xf32>
    %233 = arith.subf %224, %232 : vector<8x128xf32>
    %cst_68 = arith.constant 1.000000e+00 : f32
    %234 = vector.broadcast %cst_68 : f32 to vector<8x128xf32>
    %235 = arith.mulf %234, %0 : vector<8x128xf32>
    %236 = arith.addf %233, %235 : vector<8x128xf32>
    %cst_69 = arith.constant 5.000000e-01 : f32
    %237 = vector.broadcast %cst_69 : f32 to vector<8x128xf32>
    %238 = arith.mulf %236, %237 : vector<8x128xf32>
    %239 = arith.mulf %231, %2 : vector<8x128xf32>
    %240 = vector.shape_cast %239 : vector<8x128xf32> to vector<1x8x128xf32>
    %cst_70 = arith.constant dense<0.000000e+00> : vector<1xf32>
    %241 = vector.multi_reduction <add>, %240, %cst_70 [1, 2] : vector<1x8x128xf32> to vector<1xf32>
    %242 = vector.shape_cast %241 : vector<1xf32> to vector<1x1x1xf32>
    %243 = vector.extract %242[0, 0, 0] : f32 from vector<1x1x1xf32>
    %244 = arith.mulf %238, %2 : vector<8x128xf32>
    %245 = vector.shape_cast %244 : vector<8x128xf32> to vector<1x8x128xf32>
    %cst_71 = arith.constant dense<0.000000e+00> : vector<1xf32>
    %246 = vector.multi_reduction <add>, %245, %cst_71 [1, 2] : vector<1x8x128xf32> to vector<1xf32>
    %247 = vector.shape_cast %246 : vector<1xf32> to vector<1x1x1xf32>
    %248 = vector.extract %247[0, 0, 0] : f32 from vector<1x1x1xf32>
    %249 = arith.subf %248, %4 : f32
    %cst_72 = arith.constant 1.000000e-03 : f32
    %250 = arith.mulf %cst_72, %249 : f32
    %251 = arith.addf %3, %250 : f32
    %252 = arith.addf %243, %248 : f32
    %c16 = arith.constant 16 : index
    %253 = memref.load %arg5[%c16] : memref<80xf32, #tpu.memory_space<smem>>
    %c16_73 = arith.constant 16 : index
    %254 = memref.load %arg3[%c16_73] : memref<80xf32, #tpu.memory_space<smem>>
    %255 = vector.broadcast %254 : f32 to vector<8x128xf32>
    %256 = arith.mulf %255, %238 : vector<8x128xf32>
    %c16_74 = arith.constant 16 : index
    %257 = memref.load %arg4[%c16_74] : memref<80xf32, #tpu.memory_space<smem>>
    %258 = vector.broadcast %257 : f32 to vector<8x128xf32>
    %259 = arith.addf %256, %258 : vector<8x128xf32>
    %cst_75 = arith.constant 0.000000e+00 : f32
    %260 = vector.broadcast %cst_75 : f32 to vector<8x128xf32>
    %261 = arith.maximumf %259, %260 : vector<8x128xf32>
    %262 = vector.broadcast %253 : f32 to vector<8x128xf32>
    %263 = arith.mulf %262, %261 : vector<8x128xf32>
    %c17 = arith.constant 17 : index
    %264 = memref.load %arg5[%c17] : memref<80xf32, #tpu.memory_space<smem>>
    %c17_76 = arith.constant 17 : index
    %265 = memref.load %arg3[%c17_76] : memref<80xf32, #tpu.memory_space<smem>>
    %266 = vector.broadcast %265 : f32 to vector<8x128xf32>
    %267 = arith.mulf %266, %238 : vector<8x128xf32>
    %c17_77 = arith.constant 17 : index
    %268 = memref.load %arg4[%c17_77] : memref<80xf32, #tpu.memory_space<smem>>
    %269 = vector.broadcast %268 : f32 to vector<8x128xf32>
    %270 = arith.addf %267, %269 : vector<8x128xf32>
    %cst_78 = arith.constant 0.000000e+00 : f32
    %271 = vector.broadcast %cst_78 : f32 to vector<8x128xf32>
    %272 = arith.maximumf %270, %271 : vector<8x128xf32>
    %273 = vector.broadcast %264 : f32 to vector<8x128xf32>
    %274 = arith.mulf %273, %272 : vector<8x128xf32>
    %275 = arith.addf %263, %274 : vector<8x128xf32>
    %c18 = arith.constant 18 : index
    %276 = memref.load %arg5[%c18] : memref<80xf32, #tpu.memory_space<smem>>
    %c18_79 = arith.constant 18 : index
    %277 = memref.load %arg3[%c18_79] : memref<80xf32, #tpu.memory_space<smem>>
    %278 = vector.broadcast %277 : f32 to vector<8x128xf32>
    %279 = arith.mulf %278, %238 : vector<8x128xf32>
    %c18_80 = arith.constant 18 : index
    %280 = memref.load %arg4[%c18_80] : memref<80xf32, #tpu.memory_space<smem>>
    %281 = vector.broadcast %280 : f32 to vector<8x128xf32>
    %282 = arith.addf %279, %281 : vector<8x128xf32>
    %cst_81 = arith.constant 0.000000e+00 : f32
    %283 = vector.broadcast %cst_81 : f32 to vector<8x128xf32>
    %284 = arith.maximumf %282, %283 : vector<8x128xf32>
    %285 = vector.broadcast %276 : f32 to vector<8x128xf32>
    %286 = arith.mulf %285, %284 : vector<8x128xf32>
    %287 = arith.addf %275, %286 : vector<8x128xf32>
    %c19 = arith.constant 19 : index
    %288 = memref.load %arg5[%c19] : memref<80xf32, #tpu.memory_space<smem>>
    %c19_82 = arith.constant 19 : index
    %289 = memref.load %arg3[%c19_82] : memref<80xf32, #tpu.memory_space<smem>>
    %290 = vector.broadcast %289 : f32 to vector<8x128xf32>
    %291 = arith.mulf %290, %238 : vector<8x128xf32>
    %c19_83 = arith.constant 19 : index
    %292 = memref.load %arg4[%c19_83] : memref<80xf32, #tpu.memory_space<smem>>
    %293 = vector.broadcast %292 : f32 to vector<8x128xf32>
    %294 = arith.addf %291, %293 : vector<8x128xf32>
    %cst_84 = arith.constant 0.000000e+00 : f32
    %295 = vector.broadcast %cst_84 : f32 to vector<8x128xf32>
    %296 = arith.maximumf %294, %295 : vector<8x128xf32>
    %297 = vector.broadcast %288 : f32 to vector<8x128xf32>
    %298 = arith.mulf %297, %296 : vector<8x128xf32>
    %299 = arith.addf %287, %298 : vector<8x128xf32>
    %c20 = arith.constant 20 : index
    %300 = memref.load %arg5[%c20] : memref<80xf32, #tpu.memory_space<smem>>
    %c20_85 = arith.constant 20 : index
    %301 = memref.load %arg3[%c20_85] : memref<80xf32, #tpu.memory_space<smem>>
    %302 = vector.broadcast %301 : f32 to vector<8x128xf32>
    %303 = arith.mulf %302, %238 : vector<8x128xf32>
    %c20_86 = arith.constant 20 : index
    %304 = memref.load %arg4[%c20_86] : memref<80xf32, #tpu.memory_space<smem>>
    %305 = vector.broadcast %304 : f32 to vector<8x128xf32>
    %306 = arith.addf %303, %305 : vector<8x128xf32>
    %cst_87 = arith.constant 0.000000e+00 : f32
    %307 = vector.broadcast %cst_87 : f32 to vector<8x128xf32>
    %308 = arith.maximumf %306, %307 : vector<8x128xf32>
    %309 = vector.broadcast %300 : f32 to vector<8x128xf32>
    %310 = arith.mulf %309, %308 : vector<8x128xf32>
    %c21 = arith.constant 21 : index
    %311 = memref.load %arg5[%c21] : memref<80xf32, #tpu.memory_space<smem>>
    %c21_88 = arith.constant 21 : index
    %312 = memref.load %arg3[%c21_88] : memref<80xf32, #tpu.memory_space<smem>>
    %313 = vector.broadcast %312 : f32 to vector<8x128xf32>
    %314 = arith.mulf %313, %238 : vector<8x128xf32>
    %c21_89 = arith.constant 21 : index
    %315 = memref.load %arg4[%c21_89] : memref<80xf32, #tpu.memory_space<smem>>
    %316 = vector.broadcast %315 : f32 to vector<8x128xf32>
    %317 = arith.addf %314, %316 : vector<8x128xf32>
    %cst_90 = arith.constant 0.000000e+00 : f32
    %318 = vector.broadcast %cst_90 : f32 to vector<8x128xf32>
    %319 = arith.maximumf %317, %318 : vector<8x128xf32>
    %320 = vector.broadcast %311 : f32 to vector<8x128xf32>
    %321 = arith.mulf %320, %319 : vector<8x128xf32>
    %322 = arith.addf %310, %321 : vector<8x128xf32>
    %c22 = arith.constant 22 : index
    %323 = memref.load %arg5[%c22] : memref<80xf32, #tpu.memory_space<smem>>
    %c22_91 = arith.constant 22 : index
    %324 = memref.load %arg3[%c22_91] : memref<80xf32, #tpu.memory_space<smem>>
    %325 = vector.broadcast %324 : f32 to vector<8x128xf32>
    %326 = arith.mulf %325, %238 : vector<8x128xf32>
    %c22_92 = arith.constant 22 : index
    %327 = memref.load %arg4[%c22_92] : memref<80xf32, #tpu.memory_space<smem>>
    %328 = vector.broadcast %327 : f32 to vector<8x128xf32>
    %329 = arith.addf %326, %328 : vector<8x128xf32>
    %cst_93 = arith.constant 0.000000e+00 : f32
    %330 = vector.broadcast %cst_93 : f32 to vector<8x128xf32>
    %331 = arith.maximumf %329, %330 : vector<8x128xf32>
    %332 = vector.broadcast %323 : f32 to vector<8x128xf32>
    %333 = arith.mulf %332, %331 : vector<8x128xf32>
    %334 = arith.addf %322, %333 : vector<8x128xf32>
    %c23 = arith.constant 23 : index
    %335 = memref.load %arg5[%c23] : memref<80xf32, #tpu.memory_space<smem>>
    %c23_94 = arith.constant 23 : index
    %336 = memref.load %arg3[%c23_94] : memref<80xf32, #tpu.memory_space<smem>>
    %337 = vector.broadcast %336 : f32 to vector<8x128xf32>
    %338 = arith.mulf %337, %238 : vector<8x128xf32>
    %c23_95 = arith.constant 23 : index
    %339 = memref.load %arg4[%c23_95] : memref<80xf32, #tpu.memory_space<smem>>
    %340 = vector.broadcast %339 : f32 to vector<8x128xf32>
    %341 = arith.addf %338, %340 : vector<8x128xf32>
    %cst_96 = arith.constant 0.000000e+00 : f32
    %342 = vector.broadcast %cst_96 : f32 to vector<8x128xf32>
    %343 = arith.maximumf %341, %342 : vector<8x128xf32>
    %344 = vector.broadcast %335 : f32 to vector<8x128xf32>
    %345 = arith.mulf %344, %343 : vector<8x128xf32>
    %346 = arith.addf %334, %345 : vector<8x128xf32>
    %c24 = arith.constant 24 : index
    %347 = memref.load %arg5[%c24] : memref<80xf32, #tpu.memory_space<smem>>
    %c24_97 = arith.constant 24 : index
    %348 = memref.load %arg3[%c24_97] : memref<80xf32, #tpu.memory_space<smem>>
    %349 = vector.broadcast %348 : f32 to vector<8x128xf32>
    %350 = arith.mulf %349, %238 : vector<8x128xf32>
    %c24_98 = arith.constant 24 : index
    %351 = memref.load %arg4[%c24_98] : memref<80xf32, #tpu.memory_space<smem>>
    %352 = vector.broadcast %351 : f32 to vector<8x128xf32>
    %353 = arith.addf %350, %352 : vector<8x128xf32>
    %cst_99 = arith.constant 0.000000e+00 : f32
    %354 = vector.broadcast %cst_99 : f32 to vector<8x128xf32>
    %355 = arith.maximumf %353, %354 : vector<8x128xf32>
    %356 = vector.broadcast %347 : f32 to vector<8x128xf32>
    %357 = arith.mulf %356, %355 : vector<8x128xf32>
    %c25 = arith.constant 25 : index
    %358 = memref.load %arg5[%c25] : memref<80xf32, #tpu.memory_space<smem>>
    %c25_100 = arith.constant 25 : index
    %359 = memref.load %arg3[%c25_100] : memref<80xf32, #tpu.memory_space<smem>>
    %360 = vector.broadcast %359 : f32 to vector<8x128xf32>
    %361 = arith.mulf %360, %238 : vector<8x128xf32>
    %c25_101 = arith.constant 25 : index
    %362 = memref.load %arg4[%c25_101] : memref<80xf32, #tpu.memory_space<smem>>
    %363 = vector.broadcast %362 : f32 to vector<8x128xf32>
    %364 = arith.addf %361, %363 : vector<8x128xf32>
    %cst_102 = arith.constant 0.000000e+00 : f32
    %365 = vector.broadcast %cst_102 : f32 to vector<8x128xf32>
    %366 = arith.maximumf %364, %365 : vector<8x128xf32>
    %367 = vector.broadcast %358 : f32 to vector<8x128xf32>
    %368 = arith.mulf %367, %366 : vector<8x128xf32>
    %369 = arith.addf %357, %368 : vector<8x128xf32>
    %c26 = arith.constant 26 : index
    %370 = memref.load %arg5[%c26] : memref<80xf32, #tpu.memory_space<smem>>
    %c26_103 = arith.constant 26 : index
    %371 = memref.load %arg3[%c26_103] : memref<80xf32, #tpu.memory_space<smem>>
    %372 = vector.broadcast %371 : f32 to vector<8x128xf32>
    %373 = arith.mulf %372, %238 : vector<8x128xf32>
    %c26_104 = arith.constant 26 : index
    %374 = memref.load %arg4[%c26_104] : memref<80xf32, #tpu.memory_space<smem>>
    %375 = vector.broadcast %374 : f32 to vector<8x128xf32>
    %376 = arith.addf %373, %375 : vector<8x128xf32>
    %cst_105 = arith.constant 0.000000e+00 : f32
    %377 = vector.broadcast %cst_105 : f32 to vector<8x128xf32>
    %378 = arith.maximumf %376, %377 : vector<8x128xf32>
    %379 = vector.broadcast %370 : f32 to vector<8x128xf32>
    %380 = arith.mulf %379, %378 : vector<8x128xf32>
    %381 = arith.addf %369, %380 : vector<8x128xf32>
    %c27 = arith.constant 27 : index
    %382 = memref.load %arg5[%c27] : memref<80xf32, #tpu.memory_space<smem>>
    %c27_106 = arith.constant 27 : index
    %383 = memref.load %arg3[%c27_106] : memref<80xf32, #tpu.memory_space<smem>>
    %384 = vector.broadcast %383 : f32 to vector<8x128xf32>
    %385 = arith.mulf %384, %238 : vector<8x128xf32>
    %c27_107 = arith.constant 27 : index
    %386 = memref.load %arg4[%c27_107] : memref<80xf32, #tpu.memory_space<smem>>
    %387 = vector.broadcast %386 : f32 to vector<8x128xf32>
    %388 = arith.addf %385, %387 : vector<8x128xf32>
    %cst_108 = arith.constant 0.000000e+00 : f32
    %389 = vector.broadcast %cst_108 : f32 to vector<8x128xf32>
    %390 = arith.maximumf %388, %389 : vector<8x128xf32>
    %391 = vector.broadcast %382 : f32 to vector<8x128xf32>
    %392 = arith.mulf %391, %390 : vector<8x128xf32>
    %393 = arith.addf %381, %392 : vector<8x128xf32>
    %c28 = arith.constant 28 : index
    %394 = memref.load %arg5[%c28] : memref<80xf32, #tpu.memory_space<smem>>
    %c28_109 = arith.constant 28 : index
    %395 = memref.load %arg3[%c28_109] : memref<80xf32, #tpu.memory_space<smem>>
    %396 = vector.broadcast %395 : f32 to vector<8x128xf32>
    %397 = arith.mulf %396, %238 : vector<8x128xf32>
    %c28_110 = arith.constant 28 : index
    %398 = memref.load %arg4[%c28_110] : memref<80xf32, #tpu.memory_space<smem>>
    %399 = vector.broadcast %398 : f32 to vector<8x128xf32>
    %400 = arith.addf %397, %399 : vector<8x128xf32>
    %cst_111 = arith.constant 0.000000e+00 : f32
    %401 = vector.broadcast %cst_111 : f32 to vector<8x128xf32>
    %402 = arith.maximumf %400, %401 : vector<8x128xf32>
    %403 = vector.broadcast %394 : f32 to vector<8x128xf32>
    %404 = arith.mulf %403, %402 : vector<8x128xf32>
    %c29 = arith.constant 29 : index
    %405 = memref.load %arg5[%c29] : memref<80xf32, #tpu.memory_space<smem>>
    %c29_112 = arith.constant 29 : index
    %406 = memref.load %arg3[%c29_112] : memref<80xf32, #tpu.memory_space<smem>>
    %407 = vector.broadcast %406 : f32 to vector<8x128xf32>
    %408 = arith.mulf %407, %238 : vector<8x128xf32>
    %c29_113 = arith.constant 29 : index
    %409 = memref.load %arg4[%c29_113] : memref<80xf32, #tpu.memory_space<smem>>
    %410 = vector.broadcast %409 : f32 to vector<8x128xf32>
    %411 = arith.addf %408, %410 : vector<8x128xf32>
    %cst_114 = arith.constant 0.000000e+00 : f32
    %412 = vector.broadcast %cst_114 : f32 to vector<8x128xf32>
    %413 = arith.maximumf %411, %412 : vector<8x128xf32>
    %414 = vector.broadcast %405 : f32 to vector<8x128xf32>
    %415 = arith.mulf %414, %413 : vector<8x128xf32>
    %416 = arith.addf %404, %415 : vector<8x128xf32>
    %c30 = arith.constant 30 : index
    %417 = memref.load %arg5[%c30] : memref<80xf32, #tpu.memory_space<smem>>
    %c30_115 = arith.constant 30 : index
    %418 = memref.load %arg3[%c30_115] : memref<80xf32, #tpu.memory_space<smem>>
    %419 = vector.broadcast %418 : f32 to vector<8x128xf32>
    %420 = arith.mulf %419, %238 : vector<8x128xf32>
    %c30_116 = arith.constant 30 : index
    %421 = memref.load %arg4[%c30_116] : memref<80xf32, #tpu.memory_space<smem>>
    %422 = vector.broadcast %421 : f32 to vector<8x128xf32>
    %423 = arith.addf %420, %422 : vector<8x128xf32>
    %cst_117 = arith.constant 0.000000e+00 : f32
    %424 = vector.broadcast %cst_117 : f32 to vector<8x128xf32>
    %425 = arith.maximumf %423, %424 : vector<8x128xf32>
    %426 = vector.broadcast %417 : f32 to vector<8x128xf32>
    %427 = arith.mulf %426, %425 : vector<8x128xf32>
    %428 = arith.addf %416, %427 : vector<8x128xf32>
    %c31 = arith.constant 31 : index
    %429 = memref.load %arg5[%c31] : memref<80xf32, #tpu.memory_space<smem>>
    %c31_118 = arith.constant 31 : index
    %430 = memref.load %arg3[%c31_118] : memref<80xf32, #tpu.memory_space<smem>>
    %431 = vector.broadcast %430 : f32 to vector<8x128xf32>
    %432 = arith.mulf %431, %238 : vector<8x128xf32>
    %c31_119 = arith.constant 31 : index
    %433 = memref.load %arg4[%c31_119] : memref<80xf32, #tpu.memory_space<smem>>
    %434 = vector.broadcast %433 : f32 to vector<8x128xf32>
    %435 = arith.addf %432, %434 : vector<8x128xf32>
    %cst_120 = arith.constant 0.000000e+00 : f32
    %436 = vector.broadcast %cst_120 : f32 to vector<8x128xf32>
    %437 = arith.maximumf %435, %436 : vector<8x128xf32>
    %438 = vector.broadcast %429 : f32 to vector<8x128xf32>
    %439 = arith.mulf %438, %437 : vector<8x128xf32>
    %440 = arith.addf %428, %439 : vector<8x128xf32>
    %441 = arith.addf %299, %346 : vector<8x128xf32>
    %442 = arith.addf %393, %440 : vector<8x128xf32>
    %443 = arith.addf %441, %442 : vector<8x128xf32>
    %444 = arith.subf %238, %231 : vector<8x128xf32>
    %445 = math.absf %444 : vector<8x128xf32>
    %cst_121 = arith.constant 0.000000e+00 : f32
    %446 = vector.broadcast %cst_121 : f32 to vector<8x128xf32>
    %447 = arith.subf %446, %445 : vector<8x128xf32>
    %448 = math.exp %447 : vector<8x128xf32>
    %cst_122 = arith.constant 1.000000e+00 : f32
    %449 = vector.broadcast %cst_122 : f32 to vector<8x128xf32>
    %450 = arith.addf %449, %448 : vector<8x128xf32>
    %451 = tpu.reciprocal %450 {approx = true} : vector<8x128xf32> -> vector<8x128xf32>
    %cst_123 = arith.constant 0.000000e+00 : f32
    %452 = vector.broadcast %cst_123 : f32 to vector<8x128xf32>
    %453 = arith.cmpf oge, %444, %452 : vector<8x128xf32>
    %454 = arith.mulf %448, %451 : vector<8x128xf32>
    %455 = arith.select %453, %451, %454 : vector<8x128xi1>, vector<8x128xf32>
    %cst_124 = arith.constant 1.000000e+00 : f32
    %456 = vector.broadcast %cst_124 : f32 to vector<8x128xf32>
    %457 = arith.subf %456, %455 : vector<8x128xf32>
    %458 = arith.subf %252, %4 : f32
    %cst_125 = arith.constant 1.000000e-03 : f32
    %459 = arith.mulf %cst_125, %458 : f32
    %460 = arith.addf %251, %459 : f32
    %c1_126 = arith.constant 1 : index
    %461 = memref.load %arg6[%c1_126] : memref<5xf32, #tpu.memory_space<smem>>
    %462 = arith.subf %461, %460 : f32
    %463 = vector.broadcast %462 : f32 to vector<8x128xf32>
    %464 = arith.addf %443, %463 : vector<8x128xf32>
    %465 = arith.mulf %8, %457 : vector<8x128xf32>
    %466 = arith.subf %464, %465 : vector<8x128xf32>
    %cst_127 = arith.constant 1.000000e+00 : f32
    %467 = vector.broadcast %cst_127 : f32 to vector<8x128xf32>
    %468 = arith.mulf %467, %231 : vector<8x128xf32>
    %469 = arith.addf %466, %468 : vector<8x128xf32>
    %cst_128 = arith.constant 5.000000e-01 : f32
    %470 = vector.broadcast %cst_128 : f32 to vector<8x128xf32>
    %471 = arith.mulf %469, %470 : vector<8x128xf32>
    %472 = arith.mulf %10, %455 : vector<8x128xf32>
    %473 = arith.subf %464, %472 : vector<8x128xf32>
    %cst_129 = arith.constant 1.000000e+00 : f32
    %474 = vector.broadcast %cst_129 : f32 to vector<8x128xf32>
    %475 = arith.mulf %474, %238 : vector<8x128xf32>
    %476 = arith.addf %473, %475 : vector<8x128xf32>
    %cst_130 = arith.constant 5.000000e-01 : f32
    %477 = vector.broadcast %cst_130 : f32 to vector<8x128xf32>
    %478 = arith.mulf %476, %477 : vector<8x128xf32>
    %479 = arith.mulf %471, %2 : vector<8x128xf32>
    %480 = vector.shape_cast %479 : vector<8x128xf32> to vector<1x8x128xf32>
    %cst_131 = arith.constant dense<0.000000e+00> : vector<1xf32>
    %481 = vector.multi_reduction <add>, %480, %cst_131 [1, 2] : vector<1x8x128xf32> to vector<1xf32>
    %482 = vector.shape_cast %481 : vector<1xf32> to vector<1x1x1xf32>
    %483 = vector.extract %482[0, 0, 0] : f32 from vector<1x1x1xf32>
    %484 = arith.mulf %478, %2 : vector<8x128xf32>
    %485 = vector.shape_cast %484 : vector<8x128xf32> to vector<1x8x128xf32>
    %cst_132 = arith.constant dense<0.000000e+00> : vector<1xf32>
    %486 = vector.multi_reduction <add>, %485, %cst_132 [1, 2] : vector<1x8x128xf32> to vector<1xf32>
    %487 = vector.shape_cast %486 : vector<1xf32> to vector<1x1x1xf32>
    %488 = vector.extract %487[0, 0, 0] : f32 from vector<1x1x1xf32>
    %489 = arith.subf %488, %4 : f32
    %cst_133 = arith.constant 1.000000e-03 : f32
    %490 = arith.mulf %cst_133, %489 : f32
    %491 = arith.addf %251, %490 : f32
    %492 = arith.addf %483, %488 : f32
    %c32 = arith.constant 32 : index
    %493 = memref.load %arg5[%c32] : memref<80xf32, #tpu.memory_space<smem>>
    %c32_134 = arith.constant 32 : index
    %494 = memref.load %arg3[%c32_134] : memref<80xf32, #tpu.memory_space<smem>>
    %495 = vector.broadcast %494 : f32 to vector<8x128xf32>
    %496 = arith.mulf %495, %478 : vector<8x128xf32>
    %c32_135 = arith.constant 32 : index
    %497 = memref.load %arg4[%c32_135] : memref<80xf32, #tpu.memory_space<smem>>
    %498 = vector.broadcast %497 : f32 to vector<8x128xf32>
    %499 = arith.addf %496, %498 : vector<8x128xf32>
    %cst_136 = arith.constant 0.000000e+00 : f32
    %500 = vector.broadcast %cst_136 : f32 to vector<8x128xf32>
    %501 = arith.maximumf %499, %500 : vector<8x128xf32>
    %502 = vector.broadcast %493 : f32 to vector<8x128xf32>
    %503 = arith.mulf %502, %501 : vector<8x128xf32>
    %c33 = arith.constant 33 : index
    %504 = memref.load %arg5[%c33] : memref<80xf32, #tpu.memory_space<smem>>
    %c33_137 = arith.constant 33 : index
    %505 = memref.load %arg3[%c33_137] : memref<80xf32, #tpu.memory_space<smem>>
    %506 = vector.broadcast %505 : f32 to vector<8x128xf32>
    %507 = arith.mulf %506, %478 : vector<8x128xf32>
    %c33_138 = arith.constant 33 : index
    %508 = memref.load %arg4[%c33_138] : memref<80xf32, #tpu.memory_space<smem>>
    %509 = vector.broadcast %508 : f32 to vector<8x128xf32>
    %510 = arith.addf %507, %509 : vector<8x128xf32>
    %cst_139 = arith.constant 0.000000e+00 : f32
    %511 = vector.broadcast %cst_139 : f32 to vector<8x128xf32>
    %512 = arith.maximumf %510, %511 : vector<8x128xf32>
    %513 = vector.broadcast %504 : f32 to vector<8x128xf32>
    %514 = arith.mulf %513, %512 : vector<8x128xf32>
    %515 = arith.addf %503, %514 : vector<8x128xf32>
    %c34 = arith.constant 34 : index
    %516 = memref.load %arg5[%c34] : memref<80xf32, #tpu.memory_space<smem>>
    %c34_140 = arith.constant 34 : index
    %517 = memref.load %arg3[%c34_140] : memref<80xf32, #tpu.memory_space<smem>>
    %518 = vector.broadcast %517 : f32 to vector<8x128xf32>
    %519 = arith.mulf %518, %478 : vector<8x128xf32>
    %c34_141 = arith.constant 34 : index
    %520 = memref.load %arg4[%c34_141] : memref<80xf32, #tpu.memory_space<smem>>
    %521 = vector.broadcast %520 : f32 to vector<8x128xf32>
    %522 = arith.addf %519, %521 : vector<8x128xf32>
    %cst_142 = arith.constant 0.000000e+00 : f32
    %523 = vector.broadcast %cst_142 : f32 to vector<8x128xf32>
    %524 = arith.maximumf %522, %523 : vector<8x128xf32>
    %525 = vector.broadcast %516 : f32 to vector<8x128xf32>
    %526 = arith.mulf %525, %524 : vector<8x128xf32>
    %527 = arith.addf %515, %526 : vector<8x128xf32>
    %c35 = arith.constant 35 : index
    %528 = memref.load %arg5[%c35] : memref<80xf32, #tpu.memory_space<smem>>
    %c35_143 = arith.constant 35 : index
    %529 = memref.load %arg3[%c35_143] : memref<80xf32, #tpu.memory_space<smem>>
    %530 = vector.broadcast %529 : f32 to vector<8x128xf32>
    %531 = arith.mulf %530, %478 : vector<8x128xf32>
    %c35_144 = arith.constant 35 : index
    %532 = memref.load %arg4[%c35_144] : memref<80xf32, #tpu.memory_space<smem>>
    %533 = vector.broadcast %532 : f32 to vector<8x128xf32>
    %534 = arith.addf %531, %533 : vector<8x128xf32>
    %cst_145 = arith.constant 0.000000e+00 : f32
    %535 = vector.broadcast %cst_145 : f32 to vector<8x128xf32>
    %536 = arith.maximumf %534, %535 : vector<8x128xf32>
    %537 = vector.broadcast %528 : f32 to vector<8x128xf32>
    %538 = arith.mulf %537, %536 : vector<8x128xf32>
    %539 = arith.addf %527, %538 : vector<8x128xf32>
    %c36 = arith.constant 36 : index
    %540 = memref.load %arg5[%c36] : memref<80xf32, #tpu.memory_space<smem>>
    %c36_146 = arith.constant 36 : index
    %541 = memref.load %arg3[%c36_146] : memref<80xf32, #tpu.memory_space<smem>>
    %542 = vector.broadcast %541 : f32 to vector<8x128xf32>
    %543 = arith.mulf %542, %478 : vector<8x128xf32>
    %c36_147 = arith.constant 36 : index
    %544 = memref.load %arg4[%c36_147] : memref<80xf32, #tpu.memory_space<smem>>
    %545 = vector.broadcast %544 : f32 to vector<8x128xf32>
    %546 = arith.addf %543, %545 : vector<8x128xf32>
    %cst_148 = arith.constant 0.000000e+00 : f32
    %547 = vector.broadcast %cst_148 : f32 to vector<8x128xf32>
    %548 = arith.maximumf %546, %547 : vector<8x128xf32>
    %549 = vector.broadcast %540 : f32 to vector<8x128xf32>
    %550 = arith.mulf %549, %548 : vector<8x128xf32>
    %c37 = arith.constant 37 : index
    %551 = memref.load %arg5[%c37] : memref<80xf32, #tpu.memory_space<smem>>
    %c37_149 = arith.constant 37 : index
    %552 = memref.load %arg3[%c37_149] : memref<80xf32, #tpu.memory_space<smem>>
    %553 = vector.broadcast %552 : f32 to vector<8x128xf32>
    %554 = arith.mulf %553, %478 : vector<8x128xf32>
    %c37_150 = arith.constant 37 : index
    %555 = memref.load %arg4[%c37_150] : memref<80xf32, #tpu.memory_space<smem>>
    %556 = vector.broadcast %555 : f32 to vector<8x128xf32>
    %557 = arith.addf %554, %556 : vector<8x128xf32>
    %cst_151 = arith.constant 0.000000e+00 : f32
    %558 = vector.broadcast %cst_151 : f32 to vector<8x128xf32>
    %559 = arith.maximumf %557, %558 : vector<8x128xf32>
    %560 = vector.broadcast %551 : f32 to vector<8x128xf32>
    %561 = arith.mulf %560, %559 : vector<8x128xf32>
    %562 = arith.addf %550, %561 : vector<8x128xf32>
    %c38 = arith.constant 38 : index
    %563 = memref.load %arg5[%c38] : memref<80xf32, #tpu.memory_space<smem>>
    %c38_152 = arith.constant 38 : index
    %564 = memref.load %arg3[%c38_152] : memref<80xf32, #tpu.memory_space<smem>>
    %565 = vector.broadcast %564 : f32 to vector<8x128xf32>
    %566 = arith.mulf %565, %478 : vector<8x128xf32>
    %c38_153 = arith.constant 38 : index
    %567 = memref.load %arg4[%c38_153] : memref<80xf32, #tpu.memory_space<smem>>
    %568 = vector.broadcast %567 : f32 to vector<8x128xf32>
    %569 = arith.addf %566, %568 : vector<8x128xf32>
    %cst_154 = arith.constant 0.000000e+00 : f32
    %570 = vector.broadcast %cst_154 : f32 to vector<8x128xf32>
    %571 = arith.maximumf %569, %570 : vector<8x128xf32>
    %572 = vector.broadcast %563 : f32 to vector<8x128xf32>
    %573 = arith.mulf %572, %571 : vector<8x128xf32>
    %574 = arith.addf %562, %573 : vector<8x128xf32>
    %c39 = arith.constant 39 : index
    %575 = memref.load %arg5[%c39] : memref<80xf32, #tpu.memory_space<smem>>
    %c39_155 = arith.constant 39 : index
    %576 = memref.load %arg3[%c39_155] : memref<80xf32, #tpu.memory_space<smem>>
    %577 = vector.broadcast %576 : f32 to vector<8x128xf32>
    %578 = arith.mulf %577, %478 : vector<8x128xf32>
    %c39_156 = arith.constant 39 : index
    %579 = memref.load %arg4[%c39_156] : memref<80xf32, #tpu.memory_space<smem>>
    %580 = vector.broadcast %579 : f32 to vector<8x128xf32>
    %581 = arith.addf %578, %580 : vector<8x128xf32>
    %cst_157 = arith.constant 0.000000e+00 : f32
    %582 = vector.broadcast %cst_157 : f32 to vector<8x128xf32>
    %583 = arith.maximumf %581, %582 : vector<8x128xf32>
    %584 = vector.broadcast %575 : f32 to vector<8x128xf32>
    %585 = arith.mulf %584, %583 : vector<8x128xf32>
    %586 = arith.addf %574, %585 : vector<8x128xf32>
    %c40 = arith.constant 40 : index
    %587 = memref.load %arg5[%c40] : memref<80xf32, #tpu.memory_space<smem>>
    %c40_158 = arith.constant 40 : index
    %588 = memref.load %arg3[%c40_158] : memref<80xf32, #tpu.memory_space<smem>>
    %589 = vector.broadcast %588 : f32 to vector<8x128xf32>
    %590 = arith.mulf %589, %478 : vector<8x128xf32>
    %c40_159 = arith.constant 40 : index
    %591 = memref.load %arg4[%c40_159] : memref<80xf32, #tpu.memory_space<smem>>
    %592 = vector.broadcast %591 : f32 to vector<8x128xf32>
    %593 = arith.addf %590, %592 : vector<8x128xf32>
    %cst_160 = arith.constant 0.000000e+00 : f32
    %594 = vector.broadcast %cst_160 : f32 to vector<8x128xf32>
    %595 = arith.maximumf %593, %594 : vector<8x128xf32>
    %596 = vector.broadcast %587 : f32 to vector<8x128xf32>
    %597 = arith.mulf %596, %595 : vector<8x128xf32>
    %c41 = arith.constant 41 : index
    %598 = memref.load %arg5[%c41] : memref<80xf32, #tpu.memory_space<smem>>
    %c41_161 = arith.constant 41 : index
    %599 = memref.load %arg3[%c41_161] : memref<80xf32, #tpu.memory_space<smem>>
    %600 = vector.broadcast %599 : f32 to vector<8x128xf32>
    %601 = arith.mulf %600, %478 : vector<8x128xf32>
    %c41_162 = arith.constant 41 : index
    %602 = memref.load %arg4[%c41_162] : memref<80xf32, #tpu.memory_space<smem>>
    %603 = vector.broadcast %602 : f32 to vector<8x128xf32>
    %604 = arith.addf %601, %603 : vector<8x128xf32>
    %cst_163 = arith.constant 0.000000e+00 : f32
    %605 = vector.broadcast %cst_163 : f32 to vector<8x128xf32>
    %606 = arith.maximumf %604, %605 : vector<8x128xf32>
    %607 = vector.broadcast %598 : f32 to vector<8x128xf32>
    %608 = arith.mulf %607, %606 : vector<8x128xf32>
    %609 = arith.addf %597, %608 : vector<8x128xf32>
    %c42 = arith.constant 42 : index
    %610 = memref.load %arg5[%c42] : memref<80xf32, #tpu.memory_space<smem>>
    %c42_164 = arith.constant 42 : index
    %611 = memref.load %arg3[%c42_164] : memref<80xf32, #tpu.memory_space<smem>>
    %612 = vector.broadcast %611 : f32 to vector<8x128xf32>
    %613 = arith.mulf %612, %478 : vector<8x128xf32>
    %c42_165 = arith.constant 42 : index
    %614 = memref.load %arg4[%c42_165] : memref<80xf32, #tpu.memory_space<smem>>
    %615 = vector.broadcast %614 : f32 to vector<8x128xf32>
    %616 = arith.addf %613, %615 : vector<8x128xf32>
    %cst_166 = arith.constant 0.000000e+00 : f32
    %617 = vector.broadcast %cst_166 : f32 to vector<8x128xf32>
    %618 = arith.maximumf %616, %617 : vector<8x128xf32>
    %619 = vector.broadcast %610 : f32 to vector<8x128xf32>
    %620 = arith.mulf %619, %618 : vector<8x128xf32>
    %621 = arith.addf %609, %620 : vector<8x128xf32>
    %c43 = arith.constant 43 : index
    %622 = memref.load %arg5[%c43] : memref<80xf32, #tpu.memory_space<smem>>
    %c43_167 = arith.constant 43 : index
    %623 = memref.load %arg3[%c43_167] : memref<80xf32, #tpu.memory_space<smem>>
    %624 = vector.broadcast %623 : f32 to vector<8x128xf32>
    %625 = arith.mulf %624, %478 : vector<8x128xf32>
    %c43_168 = arith.constant 43 : index
    %626 = memref.load %arg4[%c43_168] : memref<80xf32, #tpu.memory_space<smem>>
    %627 = vector.broadcast %626 : f32 to vector<8x128xf32>
    %628 = arith.addf %625, %627 : vector<8x128xf32>
    %cst_169 = arith.constant 0.000000e+00 : f32
    %629 = vector.broadcast %cst_169 : f32 to vector<8x128xf32>
    %630 = arith.maximumf %628, %629 : vector<8x128xf32>
    %631 = vector.broadcast %622 : f32 to vector<8x128xf32>
    %632 = arith.mulf %631, %630 : vector<8x128xf32>
    %633 = arith.addf %621, %632 : vector<8x128xf32>
    %c44 = arith.constant 44 : index
    %634 = memref.load %arg5[%c44] : memref<80xf32, #tpu.memory_space<smem>>
    %c44_170 = arith.constant 44 : index
    %635 = memref.load %arg3[%c44_170] : memref<80xf32, #tpu.memory_space<smem>>
    %636 = vector.broadcast %635 : f32 to vector<8x128xf32>
    %637 = arith.mulf %636, %478 : vector<8x128xf32>
    %c44_171 = arith.constant 44 : index
    %638 = memref.load %arg4[%c44_171] : memref<80xf32, #tpu.memory_space<smem>>
    %639 = vector.broadcast %638 : f32 to vector<8x128xf32>
    %640 = arith.addf %637, %639 : vector<8x128xf32>
    %cst_172 = arith.constant 0.000000e+00 : f32
    %641 = vector.broadcast %cst_172 : f32 to vector<8x128xf32>
    %642 = arith.maximumf %640, %641 : vector<8x128xf32>
    %643 = vector.broadcast %634 : f32 to vector<8x128xf32>
    %644 = arith.mulf %643, %642 : vector<8x128xf32>
    %c45 = arith.constant 45 : index
    %645 = memref.load %arg5[%c45] : memref<80xf32, #tpu.memory_space<smem>>
    %c45_173 = arith.constant 45 : index
    %646 = memref.load %arg3[%c45_173] : memref<80xf32, #tpu.memory_space<smem>>
    %647 = vector.broadcast %646 : f32 to vector<8x128xf32>
    %648 = arith.mulf %647, %478 : vector<8x128xf32>
    %c45_174 = arith.constant 45 : index
    %649 = memref.load %arg4[%c45_174] : memref<80xf32, #tpu.memory_space<smem>>
    %650 = vector.broadcast %649 : f32 to vector<8x128xf32>
    %651 = arith.addf %648, %650 : vector<8x128xf32>
    %cst_175 = arith.constant 0.000000e+00 : f32
    %652 = vector.broadcast %cst_175 : f32 to vector<8x128xf32>
    %653 = arith.maximumf %651, %652 : vector<8x128xf32>
    %654 = vector.broadcast %645 : f32 to vector<8x128xf32>
    %655 = arith.mulf %654, %653 : vector<8x128xf32>
    %656 = arith.addf %644, %655 : vector<8x128xf32>
    %c46 = arith.constant 46 : index
    %657 = memref.load %arg5[%c46] : memref<80xf32, #tpu.memory_space<smem>>
    %c46_176 = arith.constant 46 : index
    %658 = memref.load %arg3[%c46_176] : memref<80xf32, #tpu.memory_space<smem>>
    %659 = vector.broadcast %658 : f32 to vector<8x128xf32>
    %660 = arith.mulf %659, %478 : vector<8x128xf32>
    %c46_177 = arith.constant 46 : index
    %661 = memref.load %arg4[%c46_177] : memref<80xf32, #tpu.memory_space<smem>>
    %662 = vector.broadcast %661 : f32 to vector<8x128xf32>
    %663 = arith.addf %660, %662 : vector<8x128xf32>
    %cst_178 = arith.constant 0.000000e+00 : f32
    %664 = vector.broadcast %cst_178 : f32 to vector<8x128xf32>
    %665 = arith.maximumf %663, %664 : vector<8x128xf32>
    %666 = vector.broadcast %657 : f32 to vector<8x128xf32>
    %667 = arith.mulf %666, %665 : vector<8x128xf32>
    %668 = arith.addf %656, %667 : vector<8x128xf32>
    %c47 = arith.constant 47 : index
    %669 = memref.load %arg5[%c47] : memref<80xf32, #tpu.memory_space<smem>>
    %c47_179 = arith.constant 47 : index
    %670 = memref.load %arg3[%c47_179] : memref<80xf32, #tpu.memory_space<smem>>
    %671 = vector.broadcast %670 : f32 to vector<8x128xf32>
    %672 = arith.mulf %671, %478 : vector<8x128xf32>
    %c47_180 = arith.constant 47 : index
    %673 = memref.load %arg4[%c47_180] : memref<80xf32, #tpu.memory_space<smem>>
    %674 = vector.broadcast %673 : f32 to vector<8x128xf32>
    %675 = arith.addf %672, %674 : vector<8x128xf32>
    %cst_181 = arith.constant 0.000000e+00 : f32
    %676 = vector.broadcast %cst_181 : f32 to vector<8x128xf32>
    %677 = arith.maximumf %675, %676 : vector<8x128xf32>
    %678 = vector.broadcast %669 : f32 to vector<8x128xf32>
    %679 = arith.mulf %678, %677 : vector<8x128xf32>
    %680 = arith.addf %668, %679 : vector<8x128xf32>
    %681 = arith.addf %539, %586 : vector<8x128xf32>
    %682 = arith.addf %633, %680 : vector<8x128xf32>
    %683 = arith.addf %681, %682 : vector<8x128xf32>
    %684 = arith.subf %478, %471 : vector<8x128xf32>
    %685 = math.absf %684 : vector<8x128xf32>
    %cst_182 = arith.constant 0.000000e+00 : f32
    %686 = vector.broadcast %cst_182 : f32 to vector<8x128xf32>
    %687 = arith.subf %686, %685 : vector<8x128xf32>
    %688 = math.exp %687 : vector<8x128xf32>
    %cst_183 = arith.constant 1.000000e+00 : f32
    %689 = vector.broadcast %cst_183 : f32 to vector<8x128xf32>
    %690 = arith.addf %689, %688 : vector<8x128xf32>
    %691 = tpu.reciprocal %690 {approx = true} : vector<8x128xf32> -> vector<8x128xf32>
    %cst_184 = arith.constant 0.000000e+00 : f32
    %692 = vector.broadcast %cst_184 : f32 to vector<8x128xf32>
    %693 = arith.cmpf oge, %684, %692 : vector<8x128xf32>
    %694 = arith.mulf %688, %691 : vector<8x128xf32>
    %695 = arith.select %693, %691, %694 : vector<8x128xi1>, vector<8x128xf32>
    %cst_185 = arith.constant 1.000000e+00 : f32
    %696 = vector.broadcast %cst_185 : f32 to vector<8x128xf32>
    %697 = arith.subf %696, %695 : vector<8x128xf32>
    %698 = arith.subf %492, %4 : f32
    %cst_186 = arith.constant 1.000000e-03 : f32
    %699 = arith.mulf %cst_186, %698 : f32
    %700 = arith.addf %491, %699 : f32
    %c2_187 = arith.constant 2 : index
    %701 = memref.load %arg6[%c2_187] : memref<5xf32, #tpu.memory_space<smem>>
    %702 = arith.subf %701, %700 : f32
    %703 = vector.broadcast %702 : f32 to vector<8x128xf32>
    %704 = arith.addf %683, %703 : vector<8x128xf32>
    %705 = arith.mulf %8, %697 : vector<8x128xf32>
    %706 = arith.subf %704, %705 : vector<8x128xf32>
    %cst_188 = arith.constant 1.000000e+00 : f32
    %707 = vector.broadcast %cst_188 : f32 to vector<8x128xf32>
    %708 = arith.mulf %707, %471 : vector<8x128xf32>
    %709 = arith.addf %706, %708 : vector<8x128xf32>
    %cst_189 = arith.constant 5.000000e-01 : f32
    %710 = vector.broadcast %cst_189 : f32 to vector<8x128xf32>
    %711 = arith.mulf %709, %710 : vector<8x128xf32>
    %712 = arith.mulf %10, %695 : vector<8x128xf32>
    %713 = arith.subf %704, %712 : vector<8x128xf32>
    %cst_190 = arith.constant 1.000000e+00 : f32
    %714 = vector.broadcast %cst_190 : f32 to vector<8x128xf32>
    %715 = arith.mulf %714, %478 : vector<8x128xf32>
    %716 = arith.addf %713, %715 : vector<8x128xf32>
    %cst_191 = arith.constant 5.000000e-01 : f32
    %717 = vector.broadcast %cst_191 : f32 to vector<8x128xf32>
    %718 = arith.mulf %716, %717 : vector<8x128xf32>
    %719 = arith.mulf %711, %2 : vector<8x128xf32>
    %720 = vector.shape_cast %719 : vector<8x128xf32> to vector<1x8x128xf32>
    %cst_192 = arith.constant dense<0.000000e+00> : vector<1xf32>
    %721 = vector.multi_reduction <add>, %720, %cst_192 [1, 2] : vector<1x8x128xf32> to vector<1xf32>
    %722 = vector.shape_cast %721 : vector<1xf32> to vector<1x1x1xf32>
    %723 = vector.extract %722[0, 0, 0] : f32 from vector<1x1x1xf32>
    %724 = arith.mulf %718, %2 : vector<8x128xf32>
    %725 = vector.shape_cast %724 : vector<8x128xf32> to vector<1x8x128xf32>
    %cst_193 = arith.constant dense<0.000000e+00> : vector<1xf32>
    %726 = vector.multi_reduction <add>, %725, %cst_193 [1, 2] : vector<1x8x128xf32> to vector<1xf32>
    %727 = vector.shape_cast %726 : vector<1xf32> to vector<1x1x1xf32>
    %728 = vector.extract %727[0, 0, 0] : f32 from vector<1x1x1xf32>
    %729 = arith.subf %728, %4 : f32
    %cst_194 = arith.constant 1.000000e-03 : f32
    %730 = arith.mulf %cst_194, %729 : f32
    %731 = arith.addf %491, %730 : f32
    %732 = arith.addf %723, %728 : f32
    %c48 = arith.constant 48 : index
    %733 = memref.load %arg5[%c48] : memref<80xf32, #tpu.memory_space<smem>>
    %c48_195 = arith.constant 48 : index
    %734 = memref.load %arg3[%c48_195] : memref<80xf32, #tpu.memory_space<smem>>
    %735 = vector.broadcast %734 : f32 to vector<8x128xf32>
    %736 = arith.mulf %735, %718 : vector<8x128xf32>
    %c48_196 = arith.constant 48 : index
    %737 = memref.load %arg4[%c48_196] : memref<80xf32, #tpu.memory_space<smem>>
    %738 = vector.broadcast %737 : f32 to vector<8x128xf32>
    %739 = arith.addf %736, %738 : vector<8x128xf32>
    %cst_197 = arith.constant 0.000000e+00 : f32
    %740 = vector.broadcast %cst_197 : f32 to vector<8x128xf32>
    %741 = arith.maximumf %739, %740 : vector<8x128xf32>
    %742 = vector.broadcast %733 : f32 to vector<8x128xf32>
    %743 = arith.mulf %742, %741 : vector<8x128xf32>
    %c49 = arith.constant 49 : index
    %744 = memref.load %arg5[%c49] : memref<80xf32, #tpu.memory_space<smem>>
    %c49_198 = arith.constant 49 : index
    %745 = memref.load %arg3[%c49_198] : memref<80xf32, #tpu.memory_space<smem>>
    %746 = vector.broadcast %745 : f32 to vector<8x128xf32>
    %747 = arith.mulf %746, %718 : vector<8x128xf32>
    %c49_199 = arith.constant 49 : index
    %748 = memref.load %arg4[%c49_199] : memref<80xf32, #tpu.memory_space<smem>>
    %749 = vector.broadcast %748 : f32 to vector<8x128xf32>
    %750 = arith.addf %747, %749 : vector<8x128xf32>
    %cst_200 = arith.constant 0.000000e+00 : f32
    %751 = vector.broadcast %cst_200 : f32 to vector<8x128xf32>
    %752 = arith.maximumf %750, %751 : vector<8x128xf32>
    %753 = vector.broadcast %744 : f32 to vector<8x128xf32>
    %754 = arith.mulf %753, %752 : vector<8x128xf32>
    %755 = arith.addf %743, %754 : vector<8x128xf32>
    %c50 = arith.constant 50 : index
    %756 = memref.load %arg5[%c50] : memref<80xf32, #tpu.memory_space<smem>>
    %c50_201 = arith.constant 50 : index
    %757 = memref.load %arg3[%c50_201] : memref<80xf32, #tpu.memory_space<smem>>
    %758 = vector.broadcast %757 : f32 to vector<8x128xf32>
    %759 = arith.mulf %758, %718 : vector<8x128xf32>
    %c50_202 = arith.constant 50 : index
    %760 = memref.load %arg4[%c50_202] : memref<80xf32, #tpu.memory_space<smem>>
    %761 = vector.broadcast %760 : f32 to vector<8x128xf32>
    %762 = arith.addf %759, %761 : vector<8x128xf32>
    %cst_203 = arith.constant 0.000000e+00 : f32
    %763 = vector.broadcast %cst_203 : f32 to vector<8x128xf32>
    %764 = arith.maximumf %762, %763 : vector<8x128xf32>
    %765 = vector.broadcast %756 : f32 to vector<8x128xf32>
    %766 = arith.mulf %765, %764 : vector<8x128xf32>
    %767 = arith.addf %755, %766 : vector<8x128xf32>
    %c51 = arith.constant 51 : index
    %768 = memref.load %arg5[%c51] : memref<80xf32, #tpu.memory_space<smem>>
    %c51_204 = arith.constant 51 : index
    %769 = memref.load %arg3[%c51_204] : memref<80xf32, #tpu.memory_space<smem>>
    %770 = vector.broadcast %769 : f32 to vector<8x128xf32>
    %771 = arith.mulf %770, %718 : vector<8x128xf32>
    %c51_205 = arith.constant 51 : index
    %772 = memref.load %arg4[%c51_205] : memref<80xf32, #tpu.memory_space<smem>>
    %773 = vector.broadcast %772 : f32 to vector<8x128xf32>
    %774 = arith.addf %771, %773 : vector<8x128xf32>
    %cst_206 = arith.constant 0.000000e+00 : f32
    %775 = vector.broadcast %cst_206 : f32 to vector<8x128xf32>
    %776 = arith.maximumf %774, %775 : vector<8x128xf32>
    %777 = vector.broadcast %768 : f32 to vector<8x128xf32>
    %778 = arith.mulf %777, %776 : vector<8x128xf32>
    %779 = arith.addf %767, %778 : vector<8x128xf32>
    %c52 = arith.constant 52 : index
    %780 = memref.load %arg5[%c52] : memref<80xf32, #tpu.memory_space<smem>>
    %c52_207 = arith.constant 52 : index
    %781 = memref.load %arg3[%c52_207] : memref<80xf32, #tpu.memory_space<smem>>
    %782 = vector.broadcast %781 : f32 to vector<8x128xf32>
    %783 = arith.mulf %782, %718 : vector<8x128xf32>
    %c52_208 = arith.constant 52 : index
    %784 = memref.load %arg4[%c52_208] : memref<80xf32, #tpu.memory_space<smem>>
    %785 = vector.broadcast %784 : f32 to vector<8x128xf32>
    %786 = arith.addf %783, %785 : vector<8x128xf32>
    %cst_209 = arith.constant 0.000000e+00 : f32
    %787 = vector.broadcast %cst_209 : f32 to vector<8x128xf32>
    %788 = arith.maximumf %786, %787 : vector<8x128xf32>
    %789 = vector.broadcast %780 : f32 to vector<8x128xf32>
    %790 = arith.mulf %789, %788 : vector<8x128xf32>
    %c53 = arith.constant 53 : index
    %791 = memref.load %arg5[%c53] : memref<80xf32, #tpu.memory_space<smem>>
    %c53_210 = arith.constant 53 : index
    %792 = memref.load %arg3[%c53_210] : memref<80xf32, #tpu.memory_space<smem>>
    %793 = vector.broadcast %792 : f32 to vector<8x128xf32>
    %794 = arith.mulf %793, %718 : vector<8x128xf32>
    %c53_211 = arith.constant 53 : index
    %795 = memref.load %arg4[%c53_211] : memref<80xf32, #tpu.memory_space<smem>>
    %796 = vector.broadcast %795 : f32 to vector<8x128xf32>
    %797 = arith.addf %794, %796 : vector<8x128xf32>
    %cst_212 = arith.constant 0.000000e+00 : f32
    %798 = vector.broadcast %cst_212 : f32 to vector<8x128xf32>
    %799 = arith.maximumf %797, %798 : vector<8x128xf32>
    %800 = vector.broadcast %791 : f32 to vector<8x128xf32>
    %801 = arith.mulf %800, %799 : vector<8x128xf32>
    %802 = arith.addf %790, %801 : vector<8x128xf32>
    %c54 = arith.constant 54 : index
    %803 = memref.load %arg5[%c54] : memref<80xf32, #tpu.memory_space<smem>>
    %c54_213 = arith.constant 54 : index
    %804 = memref.load %arg3[%c54_213] : memref<80xf32, #tpu.memory_space<smem>>
    %805 = vector.broadcast %804 : f32 to vector<8x128xf32>
    %806 = arith.mulf %805, %718 : vector<8x128xf32>
    %c54_214 = arith.constant 54 : index
    %807 = memref.load %arg4[%c54_214] : memref<80xf32, #tpu.memory_space<smem>>
    %808 = vector.broadcast %807 : f32 to vector<8x128xf32>
    %809 = arith.addf %806, %808 : vector<8x128xf32>
    %cst_215 = arith.constant 0.000000e+00 : f32
    %810 = vector.broadcast %cst_215 : f32 to vector<8x128xf32>
    %811 = arith.maximumf %809, %810 : vector<8x128xf32>
    %812 = vector.broadcast %803 : f32 to vector<8x128xf32>
    %813 = arith.mulf %812, %811 : vector<8x128xf32>
    %814 = arith.addf %802, %813 : vector<8x128xf32>
    %c55 = arith.constant 55 : index
    %815 = memref.load %arg5[%c55] : memref<80xf32, #tpu.memory_space<smem>>
    %c55_216 = arith.constant 55 : index
    %816 = memref.load %arg3[%c55_216] : memref<80xf32, #tpu.memory_space<smem>>
    %817 = vector.broadcast %816 : f32 to vector<8x128xf32>
    %818 = arith.mulf %817, %718 : vector<8x128xf32>
    %c55_217 = arith.constant 55 : index
    %819 = memref.load %arg4[%c55_217] : memref<80xf32, #tpu.memory_space<smem>>
    %820 = vector.broadcast %819 : f32 to vector<8x128xf32>
    %821 = arith.addf %818, %820 : vector<8x128xf32>
    %cst_218 = arith.constant 0.000000e+00 : f32
    %822 = vector.broadcast %cst_218 : f32 to vector<8x128xf32>
    %823 = arith.maximumf %821, %822 : vector<8x128xf32>
    %824 = vector.broadcast %815 : f32 to vector<8x128xf32>
    %825 = arith.mulf %824, %823 : vector<8x128xf32>
    %826 = arith.addf %814, %825 : vector<8x128xf32>
    %c56 = arith.constant 56 : index
    %827 = memref.load %arg5[%c56] : memref<80xf32, #tpu.memory_space<smem>>
    %c56_219 = arith.constant 56 : index
    %828 = memref.load %arg3[%c56_219] : memref<80xf32, #tpu.memory_space<smem>>
    %829 = vector.broadcast %828 : f32 to vector<8x128xf32>
    %830 = arith.mulf %829, %718 : vector<8x128xf32>
    %c56_220 = arith.constant 56 : index
    %831 = memref.load %arg4[%c56_220] : memref<80xf32, #tpu.memory_space<smem>>
    %832 = vector.broadcast %831 : f32 to vector<8x128xf32>
    %833 = arith.addf %830, %832 : vector<8x128xf32>
    %cst_221 = arith.constant 0.000000e+00 : f32
    %834 = vector.broadcast %cst_221 : f32 to vector<8x128xf32>
    %835 = arith.maximumf %833, %834 : vector<8x128xf32>
    %836 = vector.broadcast %827 : f32 to vector<8x128xf32>
    %837 = arith.mulf %836, %835 : vector<8x128xf32>
    %c57 = arith.constant 57 : index
    %838 = memref.load %arg5[%c57] : memref<80xf32, #tpu.memory_space<smem>>
    %c57_222 = arith.constant 57 : index
    %839 = memref.load %arg3[%c57_222] : memref<80xf32, #tpu.memory_space<smem>>
    %840 = vector.broadcast %839 : f32 to vector<8x128xf32>
    %841 = arith.mulf %840, %718 : vector<8x128xf32>
    %c57_223 = arith.constant 57 : index
    %842 = memref.load %arg4[%c57_223] : memref<80xf32, #tpu.memory_space<smem>>
    %843 = vector.broadcast %842 : f32 to vector<8x128xf32>
    %844 = arith.addf %841, %843 : vector<8x128xf32>
    %cst_224 = arith.constant 0.000000e+00 : f32
    %845 = vector.broadcast %cst_224 : f32 to vector<8x128xf32>
    %846 = arith.maximumf %844, %845 : vector<8x128xf32>
    %847 = vector.broadcast %838 : f32 to vector<8x128xf32>
    %848 = arith.mulf %847, %846 : vector<8x128xf32>
    %849 = arith.addf %837, %848 : vector<8x128xf32>
    %c58 = arith.constant 58 : index
    %850 = memref.load %arg5[%c58] : memref<80xf32, #tpu.memory_space<smem>>
    %c58_225 = arith.constant 58 : index
    %851 = memref.load %arg3[%c58_225] : memref<80xf32, #tpu.memory_space<smem>>
    %852 = vector.broadcast %851 : f32 to vector<8x128xf32>
    %853 = arith.mulf %852, %718 : vector<8x128xf32>
    %c58_226 = arith.constant 58 : index
    %854 = memref.load %arg4[%c58_226] : memref<80xf32, #tpu.memory_space<smem>>
    %855 = vector.broadcast %854 : f32 to vector<8x128xf32>
    %856 = arith.addf %853, %855 : vector<8x128xf32>
    %cst_227 = arith.constant 0.000000e+00 : f32
    %857 = vector.broadcast %cst_227 : f32 to vector<8x128xf32>
    %858 = arith.maximumf %856, %857 : vector<8x128xf32>
    %859 = vector.broadcast %850 : f32 to vector<8x128xf32>
    %860 = arith.mulf %859, %858 : vector<8x128xf32>
    %861 = arith.addf %849, %860 : vector<8x128xf32>
    %c59 = arith.constant 59 : index
    %862 = memref.load %arg5[%c59] : memref<80xf32, #tpu.memory_space<smem>>
    %c59_228 = arith.constant 59 : index
    %863 = memref.load %arg3[%c59_228] : memref<80xf32, #tpu.memory_space<smem>>
    %864 = vector.broadcast %863 : f32 to vector<8x128xf32>
    %865 = arith.mulf %864, %718 : vector<8x128xf32>
    %c59_229 = arith.constant 59 : index
    %866 = memref.load %arg4[%c59_229] : memref<80xf32, #tpu.memory_space<smem>>
    %867 = vector.broadcast %866 : f32 to vector<8x128xf32>
    %868 = arith.addf %865, %867 : vector<8x128xf32>
    %cst_230 = arith.constant 0.000000e+00 : f32
    %869 = vector.broadcast %cst_230 : f32 to vector<8x128xf32>
    %870 = arith.maximumf %868, %869 : vector<8x128xf32>
    %871 = vector.broadcast %862 : f32 to vector<8x128xf32>
    %872 = arith.mulf %871, %870 : vector<8x128xf32>
    %873 = arith.addf %861, %872 : vector<8x128xf32>
    %c60 = arith.constant 60 : index
    %874 = memref.load %arg5[%c60] : memref<80xf32, #tpu.memory_space<smem>>
    %c60_231 = arith.constant 60 : index
    %875 = memref.load %arg3[%c60_231] : memref<80xf32, #tpu.memory_space<smem>>
    %876 = vector.broadcast %875 : f32 to vector<8x128xf32>
    %877 = arith.mulf %876, %718 : vector<8x128xf32>
    %c60_232 = arith.constant 60 : index
    %878 = memref.load %arg4[%c60_232] : memref<80xf32, #tpu.memory_space<smem>>
    %879 = vector.broadcast %878 : f32 to vector<8x128xf32>
    %880 = arith.addf %877, %879 : vector<8x128xf32>
    %cst_233 = arith.constant 0.000000e+00 : f32
    %881 = vector.broadcast %cst_233 : f32 to vector<8x128xf32>
    %882 = arith.maximumf %880, %881 : vector<8x128xf32>
    %883 = vector.broadcast %874 : f32 to vector<8x128xf32>
    %884 = arith.mulf %883, %882 : vector<8x128xf32>
    %c61 = arith.constant 61 : index
    %885 = memref.load %arg5[%c61] : memref<80xf32, #tpu.memory_space<smem>>
    %c61_234 = arith.constant 61 : index
    %886 = memref.load %arg3[%c61_234] : memref<80xf32, #tpu.memory_space<smem>>
    %887 = vector.broadcast %886 : f32 to vector<8x128xf32>
    %888 = arith.mulf %887, %718 : vector<8x128xf32>
    %c61_235 = arith.constant 61 : index
    %889 = memref.load %arg4[%c61_235] : memref<80xf32, #tpu.memory_space<smem>>
    %890 = vector.broadcast %889 : f32 to vector<8x128xf32>
    %891 = arith.addf %888, %890 : vector<8x128xf32>
    %cst_236 = arith.constant 0.000000e+00 : f32
    %892 = vector.broadcast %cst_236 : f32 to vector<8x128xf32>
    %893 = arith.maximumf %891, %892 : vector<8x128xf32>
    %894 = vector.broadcast %885 : f32 to vector<8x128xf32>
    %895 = arith.mulf %894, %893 : vector<8x128xf32>
    %896 = arith.addf %884, %895 : vector<8x128xf32>
    %c62 = arith.constant 62 : index
    %897 = memref.load %arg5[%c62] : memref<80xf32, #tpu.memory_space<smem>>
    %c62_237 = arith.constant 62 : index
    %898 = memref.load %arg3[%c62_237] : memref<80xf32, #tpu.memory_space<smem>>
    %899 = vector.broadcast %898 : f32 to vector<8x128xf32>
    %900 = arith.mulf %899, %718 : vector<8x128xf32>
    %c62_238 = arith.constant 62 : index
    %901 = memref.load %arg4[%c62_238] : memref<80xf32, #tpu.memory_space<smem>>
    %902 = vector.broadcast %901 : f32 to vector<8x128xf32>
    %903 = arith.addf %900, %902 : vector<8x128xf32>
    %cst_239 = arith.constant 0.000000e+00 : f32
    %904 = vector.broadcast %cst_239 : f32 to vector<8x128xf32>
    %905 = arith.maximumf %903, %904 : vector<8x128xf32>
    %906 = vector.broadcast %897 : f32 to vector<8x128xf32>
    %907 = arith.mulf %906, %905 : vector<8x128xf32>
    %908 = arith.addf %896, %907 : vector<8x128xf32>
    %c63 = arith.constant 63 : index
    %909 = memref.load %arg5[%c63] : memref<80xf32, #tpu.memory_space<smem>>
    %c63_240 = arith.constant 63 : index
    %910 = memref.load %arg3[%c63_240] : memref<80xf32, #tpu.memory_space<smem>>
    %911 = vector.broadcast %910 : f32 to vector<8x128xf32>
    %912 = arith.mulf %911, %718 : vector<8x128xf32>
    %c63_241 = arith.constant 63 : index
    %913 = memref.load %arg4[%c63_241] : memref<80xf32, #tpu.memory_space<smem>>
    %914 = vector.broadcast %913 : f32 to vector<8x128xf32>
    %915 = arith.addf %912, %914 : vector<8x128xf32>
    %cst_242 = arith.constant 0.000000e+00 : f32
    %916 = vector.broadcast %cst_242 : f32 to vector<8x128xf32>
    %917 = arith.maximumf %915, %916 : vector<8x128xf32>
    %918 = vector.broadcast %909 : f32 to vector<8x128xf32>
    %919 = arith.mulf %918, %917 : vector<8x128xf32>
    %920 = arith.addf %908, %919 : vector<8x128xf32>
    %921 = arith.addf %779, %826 : vector<8x128xf32>
    %922 = arith.addf %873, %920 : vector<8x128xf32>
    %923 = arith.addf %921, %922 : vector<8x128xf32>
    %924 = arith.subf %718, %711 : vector<8x128xf32>
    %925 = math.absf %924 : vector<8x128xf32>
    %cst_243 = arith.constant 0.000000e+00 : f32
    %926 = vector.broadcast %cst_243 : f32 to vector<8x128xf32>
    %927 = arith.subf %926, %925 : vector<8x128xf32>
    %928 = math.exp %927 : vector<8x128xf32>
    %cst_244 = arith.constant 1.000000e+00 : f32
    %929 = vector.broadcast %cst_244 : f32 to vector<8x128xf32>
    %930 = arith.addf %929, %928 : vector<8x128xf32>
    %931 = tpu.reciprocal %930 {approx = true} : vector<8x128xf32> -> vector<8x128xf32>
    %cst_245 = arith.constant 0.000000e+00 : f32
    %932 = vector.broadcast %cst_245 : f32 to vector<8x128xf32>
    %933 = arith.cmpf oge, %924, %932 : vector<8x128xf32>
    %934 = arith.mulf %928, %931 : vector<8x128xf32>
    %935 = arith.select %933, %931, %934 : vector<8x128xi1>, vector<8x128xf32>
    %cst_246 = arith.constant 1.000000e+00 : f32
    %936 = vector.broadcast %cst_246 : f32 to vector<8x128xf32>
    %937 = arith.subf %936, %935 : vector<8x128xf32>
    %938 = arith.subf %732, %4 : f32
    %cst_247 = arith.constant 1.000000e-03 : f32
    %939 = arith.mulf %cst_247, %938 : f32
    %940 = arith.addf %731, %939 : f32
    %c3_248 = arith.constant 3 : index
    %941 = memref.load %arg6[%c3_248] : memref<5xf32, #tpu.memory_space<smem>>
    %942 = arith.subf %941, %940 : f32
    %943 = vector.broadcast %942 : f32 to vector<8x128xf32>
    %944 = arith.addf %923, %943 : vector<8x128xf32>
    %945 = arith.mulf %8, %937 : vector<8x128xf32>
    %946 = arith.subf %944, %945 : vector<8x128xf32>
    %cst_249 = arith.constant 1.000000e+00 : f32
    %947 = vector.broadcast %cst_249 : f32 to vector<8x128xf32>
    %948 = arith.mulf %947, %711 : vector<8x128xf32>
    %949 = arith.addf %946, %948 : vector<8x128xf32>
    %cst_250 = arith.constant 5.000000e-01 : f32
    %950 = vector.broadcast %cst_250 : f32 to vector<8x128xf32>
    %951 = arith.mulf %949, %950 : vector<8x128xf32>
    %952 = arith.mulf %10, %935 : vector<8x128xf32>
    %953 = arith.subf %944, %952 : vector<8x128xf32>
    %cst_251 = arith.constant 1.000000e+00 : f32
    %954 = vector.broadcast %cst_251 : f32 to vector<8x128xf32>
    %955 = arith.mulf %954, %718 : vector<8x128xf32>
    %956 = arith.addf %953, %955 : vector<8x128xf32>
    %cst_252 = arith.constant 5.000000e-01 : f32
    %957 = vector.broadcast %cst_252 : f32 to vector<8x128xf32>
    %958 = arith.mulf %956, %957 : vector<8x128xf32>
    %959 = arith.mulf %951, %2 : vector<8x128xf32>
    %960 = vector.shape_cast %959 : vector<8x128xf32> to vector<1x8x128xf32>
    %cst_253 = arith.constant dense<0.000000e+00> : vector<1xf32>
    %961 = vector.multi_reduction <add>, %960, %cst_253 [1, 2] : vector<1x8x128xf32> to vector<1xf32>
    %962 = vector.shape_cast %961 : vector<1xf32> to vector<1x1x1xf32>
    %963 = vector.extract %962[0, 0, 0] : f32 from vector<1x1x1xf32>
    %964 = arith.mulf %958, %2 : vector<8x128xf32>
    %965 = vector.shape_cast %964 : vector<8x128xf32> to vector<1x8x128xf32>
    %cst_254 = arith.constant dense<0.000000e+00> : vector<1xf32>
    %966 = vector.multi_reduction <add>, %965, %cst_254 [1, 2] : vector<1x8x128xf32> to vector<1xf32>
    %967 = vector.shape_cast %966 : vector<1xf32> to vector<1x1x1xf32>
    %968 = vector.extract %967[0, 0, 0] : f32 from vector<1x1x1xf32>
    %969 = arith.subf %968, %4 : f32
    %cst_255 = arith.constant 1.000000e-03 : f32
    %970 = arith.mulf %cst_255, %969 : f32
    %971 = arith.addf %731, %970 : f32
    %972 = arith.addf %963, %968 : f32
    %c64 = arith.constant 64 : index
    %973 = memref.load %arg5[%c64] : memref<80xf32, #tpu.memory_space<smem>>
    %c64_256 = arith.constant 64 : index
    %974 = memref.load %arg3[%c64_256] : memref<80xf32, #tpu.memory_space<smem>>
    %975 = vector.broadcast %974 : f32 to vector<8x128xf32>
    %976 = arith.mulf %975, %958 : vector<8x128xf32>
    %c64_257 = arith.constant 64 : index
    %977 = memref.load %arg4[%c64_257] : memref<80xf32, #tpu.memory_space<smem>>
    %978 = vector.broadcast %977 : f32 to vector<8x128xf32>
    %979 = arith.addf %976, %978 : vector<8x128xf32>
    %cst_258 = arith.constant 0.000000e+00 : f32
    %980 = vector.broadcast %cst_258 : f32 to vector<8x128xf32>
    %981 = arith.maximumf %979, %980 : vector<8x128xf32>
    %982 = vector.broadcast %973 : f32 to vector<8x128xf32>
    %983 = arith.mulf %982, %981 : vector<8x128xf32>
    %c65 = arith.constant 65 : index
    %984 = memref.load %arg5[%c65] : memref<80xf32, #tpu.memory_space<smem>>
    %c65_259 = arith.constant 65 : index
    %985 = memref.load %arg3[%c65_259] : memref<80xf32, #tpu.memory_space<smem>>
    %986 = vector.broadcast %985 : f32 to vector<8x128xf32>
    %987 = arith.mulf %986, %958 : vector<8x128xf32>
    %c65_260 = arith.constant 65 : index
    %988 = memref.load %arg4[%c65_260] : memref<80xf32, #tpu.memory_space<smem>>
    %989 = vector.broadcast %988 : f32 to vector<8x128xf32>
    %990 = arith.addf %987, %989 : vector<8x128xf32>
    %cst_261 = arith.constant 0.000000e+00 : f32
    %991 = vector.broadcast %cst_261 : f32 to vector<8x128xf32>
    %992 = arith.maximumf %990, %991 : vector<8x128xf32>
    %993 = vector.broadcast %984 : f32 to vector<8x128xf32>
    %994 = arith.mulf %993, %992 : vector<8x128xf32>
    %995 = arith.addf %983, %994 : vector<8x128xf32>
    %c66 = arith.constant 66 : index
    %996 = memref.load %arg5[%c66] : memref<80xf32, #tpu.memory_space<smem>>
    %c66_262 = arith.constant 66 : index
    %997 = memref.load %arg3[%c66_262] : memref<80xf32, #tpu.memory_space<smem>>
    %998 = vector.broadcast %997 : f32 to vector<8x128xf32>
    %999 = arith.mulf %998, %958 : vector<8x128xf32>
    %c66_263 = arith.constant 66 : index
    %1000 = memref.load %arg4[%c66_263] : memref<80xf32, #tpu.memory_space<smem>>
    %1001 = vector.broadcast %1000 : f32 to vector<8x128xf32>
    %1002 = arith.addf %999, %1001 : vector<8x128xf32>
    %cst_264 = arith.constant 0.000000e+00 : f32
    %1003 = vector.broadcast %cst_264 : f32 to vector<8x128xf32>
    %1004 = arith.maximumf %1002, %1003 : vector<8x128xf32>
    %1005 = vector.broadcast %996 : f32 to vector<8x128xf32>
    %1006 = arith.mulf %1005, %1004 : vector<8x128xf32>
    %1007 = arith.addf %995, %1006 : vector<8x128xf32>
    %c67 = arith.constant 67 : index
    %1008 = memref.load %arg5[%c67] : memref<80xf32, #tpu.memory_space<smem>>
    %c67_265 = arith.constant 67 : index
    %1009 = memref.load %arg3[%c67_265] : memref<80xf32, #tpu.memory_space<smem>>
    %1010 = vector.broadcast %1009 : f32 to vector<8x128xf32>
    %1011 = arith.mulf %1010, %958 : vector<8x128xf32>
    %c67_266 = arith.constant 67 : index
    %1012 = memref.load %arg4[%c67_266] : memref<80xf32, #tpu.memory_space<smem>>
    %1013 = vector.broadcast %1012 : f32 to vector<8x128xf32>
    %1014 = arith.addf %1011, %1013 : vector<8x128xf32>
    %cst_267 = arith.constant 0.000000e+00 : f32
    %1015 = vector.broadcast %cst_267 : f32 to vector<8x128xf32>
    %1016 = arith.maximumf %1014, %1015 : vector<8x128xf32>
    %1017 = vector.broadcast %1008 : f32 to vector<8x128xf32>
    %1018 = arith.mulf %1017, %1016 : vector<8x128xf32>
    %1019 = arith.addf %1007, %1018 : vector<8x128xf32>
    %c68 = arith.constant 68 : index
    %1020 = memref.load %arg5[%c68] : memref<80xf32, #tpu.memory_space<smem>>
    %c68_268 = arith.constant 68 : index
    %1021 = memref.load %arg3[%c68_268] : memref<80xf32, #tpu.memory_space<smem>>
    %1022 = vector.broadcast %1021 : f32 to vector<8x128xf32>
    %1023 = arith.mulf %1022, %958 : vector<8x128xf32>
    %c68_269 = arith.constant 68 : index
    %1024 = memref.load %arg4[%c68_269] : memref<80xf32, #tpu.memory_space<smem>>
    %1025 = vector.broadcast %1024 : f32 to vector<8x128xf32>
    %1026 = arith.addf %1023, %1025 : vector<8x128xf32>
    %cst_270 = arith.constant 0.000000e+00 : f32
    %1027 = vector.broadcast %cst_270 : f32 to vector<8x128xf32>
    %1028 = arith.maximumf %1026, %1027 : vector<8x128xf32>
    %1029 = vector.broadcast %1020 : f32 to vector<8x128xf32>
    %1030 = arith.mulf %1029, %1028 : vector<8x128xf32>
    %c69 = arith.constant 69 : index
    %1031 = memref.load %arg5[%c69] : memref<80xf32, #tpu.memory_space<smem>>
    %c69_271 = arith.constant 69 : index
    %1032 = memref.load %arg3[%c69_271] : memref<80xf32, #tpu.memory_space<smem>>
    %1033 = vector.broadcast %1032 : f32 to vector<8x128xf32>
    %1034 = arith.mulf %1033, %958 : vector<8x128xf32>
    %c69_272 = arith.constant 69 : index
    %1035 = memref.load %arg4[%c69_272] : memref<80xf32, #tpu.memory_space<smem>>
    %1036 = vector.broadcast %1035 : f32 to vector<8x128xf32>
    %1037 = arith.addf %1034, %1036 : vector<8x128xf32>
    %cst_273 = arith.constant 0.000000e+00 : f32
    %1038 = vector.broadcast %cst_273 : f32 to vector<8x128xf32>
    %1039 = arith.maximumf %1037, %1038 : vector<8x128xf32>
    %1040 = vector.broadcast %1031 : f32 to vector<8x128xf32>
    %1041 = arith.mulf %1040, %1039 : vector<8x128xf32>
    %1042 = arith.addf %1030, %1041 : vector<8x128xf32>
    %c70 = arith.constant 70 : index
    %1043 = memref.load %arg5[%c70] : memref<80xf32, #tpu.memory_space<smem>>
    %c70_274 = arith.constant 70 : index
    %1044 = memref.load %arg3[%c70_274] : memref<80xf32, #tpu.memory_space<smem>>
    %1045 = vector.broadcast %1044 : f32 to vector<8x128xf32>
    %1046 = arith.mulf %1045, %958 : vector<8x128xf32>
    %c70_275 = arith.constant 70 : index
    %1047 = memref.load %arg4[%c70_275] : memref<80xf32, #tpu.memory_space<smem>>
    %1048 = vector.broadcast %1047 : f32 to vector<8x128xf32>
    %1049 = arith.addf %1046, %1048 : vector<8x128xf32>
    %cst_276 = arith.constant 0.000000e+00 : f32
    %1050 = vector.broadcast %cst_276 : f32 to vector<8x128xf32>
    %1051 = arith.maximumf %1049, %1050 : vector<8x128xf32>
    %1052 = vector.broadcast %1043 : f32 to vector<8x128xf32>
    %1053 = arith.mulf %1052, %1051 : vector<8x128xf32>
    %1054 = arith.addf %1042, %1053 : vector<8x128xf32>
    %c71 = arith.constant 71 : index
    %1055 = memref.load %arg5[%c71] : memref<80xf32, #tpu.memory_space<smem>>
    %c71_277 = arith.constant 71 : index
    %1056 = memref.load %arg3[%c71_277] : memref<80xf32, #tpu.memory_space<smem>>
    %1057 = vector.broadcast %1056 : f32 to vector<8x128xf32>
    %1058 = arith.mulf %1057, %958 : vector<8x128xf32>
    %c71_278 = arith.constant 71 : index
    %1059 = memref.load %arg4[%c71_278] : memref<80xf32, #tpu.memory_space<smem>>
    %1060 = vector.broadcast %1059 : f32 to vector<8x128xf32>
    %1061 = arith.addf %1058, %1060 : vector<8x128xf32>
    %cst_279 = arith.constant 0.000000e+00 : f32
    %1062 = vector.broadcast %cst_279 : f32 to vector<8x128xf32>
    %1063 = arith.maximumf %1061, %1062 : vector<8x128xf32>
    %1064 = vector.broadcast %1055 : f32 to vector<8x128xf32>
    %1065 = arith.mulf %1064, %1063 : vector<8x128xf32>
    %1066 = arith.addf %1054, %1065 : vector<8x128xf32>
    %c72 = arith.constant 72 : index
    %1067 = memref.load %arg5[%c72] : memref<80xf32, #tpu.memory_space<smem>>
    %c72_280 = arith.constant 72 : index
    %1068 = memref.load %arg3[%c72_280] : memref<80xf32, #tpu.memory_space<smem>>
    %1069 = vector.broadcast %1068 : f32 to vector<8x128xf32>
    %1070 = arith.mulf %1069, %958 : vector<8x128xf32>
    %c72_281 = arith.constant 72 : index
    %1071 = memref.load %arg4[%c72_281] : memref<80xf32, #tpu.memory_space<smem>>
    %1072 = vector.broadcast %1071 : f32 to vector<8x128xf32>
    %1073 = arith.addf %1070, %1072 : vector<8x128xf32>
    %cst_282 = arith.constant 0.000000e+00 : f32
    %1074 = vector.broadcast %cst_282 : f32 to vector<8x128xf32>
    %1075 = arith.maximumf %1073, %1074 : vector<8x128xf32>
    %1076 = vector.broadcast %1067 : f32 to vector<8x128xf32>
    %1077 = arith.mulf %1076, %1075 : vector<8x128xf32>
    %c73 = arith.constant 73 : index
    %1078 = memref.load %arg5[%c73] : memref<80xf32, #tpu.memory_space<smem>>
    %c73_283 = arith.constant 73 : index
    %1079 = memref.load %arg3[%c73_283] : memref<80xf32, #tpu.memory_space<smem>>
    %1080 = vector.broadcast %1079 : f32 to vector<8x128xf32>
    %1081 = arith.mulf %1080, %958 : vector<8x128xf32>
    %c73_284 = arith.constant 73 : index
    %1082 = memref.load %arg4[%c73_284] : memref<80xf32, #tpu.memory_space<smem>>
    %1083 = vector.broadcast %1082 : f32 to vector<8x128xf32>
    %1084 = arith.addf %1081, %1083 : vector<8x128xf32>
    %cst_285 = arith.constant 0.000000e+00 : f32
    %1085 = vector.broadcast %cst_285 : f32 to vector<8x128xf32>
    %1086 = arith.maximumf %1084, %1085 : vector<8x128xf32>
    %1087 = vector.broadcast %1078 : f32 to vector<8x128xf32>
    %1088 = arith.mulf %1087, %1086 : vector<8x128xf32>
    %1089 = arith.addf %1077, %1088 : vector<8x128xf32>
    %c74 = arith.constant 74 : index
    %1090 = memref.load %arg5[%c74] : memref<80xf32, #tpu.memory_space<smem>>
    %c74_286 = arith.constant 74 : index
    %1091 = memref.load %arg3[%c74_286] : memref<80xf32, #tpu.memory_space<smem>>
    %1092 = vector.broadcast %1091 : f32 to vector<8x128xf32>
    %1093 = arith.mulf %1092, %958 : vector<8x128xf32>
    %c74_287 = arith.constant 74 : index
    %1094 = memref.load %arg4[%c74_287] : memref<80xf32, #tpu.memory_space<smem>>
    %1095 = vector.broadcast %1094 : f32 to vector<8x128xf32>
    %1096 = arith.addf %1093, %1095 : vector<8x128xf32>
    %cst_288 = arith.constant 0.000000e+00 : f32
    %1097 = vector.broadcast %cst_288 : f32 to vector<8x128xf32>
    %1098 = arith.maximumf %1096, %1097 : vector<8x128xf32>
    %1099 = vector.broadcast %1090 : f32 to vector<8x128xf32>
    %1100 = arith.mulf %1099, %1098 : vector<8x128xf32>
    %1101 = arith.addf %1089, %1100 : vector<8x128xf32>
    %c75 = arith.constant 75 : index
    %1102 = memref.load %arg5[%c75] : memref<80xf32, #tpu.memory_space<smem>>
    %c75_289 = arith.constant 75 : index
    %1103 = memref.load %arg3[%c75_289] : memref<80xf32, #tpu.memory_space<smem>>
    %1104 = vector.broadcast %1103 : f32 to vector<8x128xf32>
    %1105 = arith.mulf %1104, %958 : vector<8x128xf32>
    %c75_290 = arith.constant 75 : index
    %1106 = memref.load %arg4[%c75_290] : memref<80xf32, #tpu.memory_space<smem>>
    %1107 = vector.broadcast %1106 : f32 to vector<8x128xf32>
    %1108 = arith.addf %1105, %1107 : vector<8x128xf32>
    %cst_291 = arith.constant 0.000000e+00 : f32
    %1109 = vector.broadcast %cst_291 : f32 to vector<8x128xf32>
    %1110 = arith.maximumf %1108, %1109 : vector<8x128xf32>
    %1111 = vector.broadcast %1102 : f32 to vector<8x128xf32>
    %1112 = arith.mulf %1111, %1110 : vector<8x128xf32>
    %1113 = arith.addf %1101, %1112 : vector<8x128xf32>
    %c76 = arith.constant 76 : index
    %1114 = memref.load %arg5[%c76] : memref<80xf32, #tpu.memory_space<smem>>
    %c76_292 = arith.constant 76 : index
    %1115 = memref.load %arg3[%c76_292] : memref<80xf32, #tpu.memory_space<smem>>
    %1116 = vector.broadcast %1115 : f32 to vector<8x128xf32>
    %1117 = arith.mulf %1116, %958 : vector<8x128xf32>
    %c76_293 = arith.constant 76 : index
    %1118 = memref.load %arg4[%c76_293] : memref<80xf32, #tpu.memory_space<smem>>
    %1119 = vector.broadcast %1118 : f32 to vector<8x128xf32>
    %1120 = arith.addf %1117, %1119 : vector<8x128xf32>
    %cst_294 = arith.constant 0.000000e+00 : f32
    %1121 = vector.broadcast %cst_294 : f32 to vector<8x128xf32>
    %1122 = arith.maximumf %1120, %1121 : vector<8x128xf32>
    %1123 = vector.broadcast %1114 : f32 to vector<8x128xf32>
    %1124 = arith.mulf %1123, %1122 : vector<8x128xf32>
    %c77 = arith.constant 77 : index
    %1125 = memref.load %arg5[%c77] : memref<80xf32, #tpu.memory_space<smem>>
    %c77_295 = arith.constant 77 : index
    %1126 = memref.load %arg3[%c77_295] : memref<80xf32, #tpu.memory_space<smem>>
    %1127 = vector.broadcast %1126 : f32 to vector<8x128xf32>
    %1128 = arith.mulf %1127, %958 : vector<8x128xf32>
    %c77_296 = arith.constant 77 : index
    %1129 = memref.load %arg4[%c77_296] : memref<80xf32, #tpu.memory_space<smem>>
    %1130 = vector.broadcast %1129 : f32 to vector<8x128xf32>
    %1131 = arith.addf %1128, %1130 : vector<8x128xf32>
    %cst_297 = arith.constant 0.000000e+00 : f32
    %1132 = vector.broadcast %cst_297 : f32 to vector<8x128xf32>
    %1133 = arith.maximumf %1131, %1132 : vector<8x128xf32>
    %1134 = vector.broadcast %1125 : f32 to vector<8x128xf32>
    %1135 = arith.mulf %1134, %1133 : vector<8x128xf32>
    %1136 = arith.addf %1124, %1135 : vector<8x128xf32>
    %c78 = arith.constant 78 : index
    %1137 = memref.load %arg5[%c78] : memref<80xf32, #tpu.memory_space<smem>>
    %c78_298 = arith.constant 78 : index
    %1138 = memref.load %arg3[%c78_298] : memref<80xf32, #tpu.memory_space<smem>>
    %1139 = vector.broadcast %1138 : f32 to vector<8x128xf32>
    %1140 = arith.mulf %1139, %958 : vector<8x128xf32>
    %c78_299 = arith.constant 78 : index
    %1141 = memref.load %arg4[%c78_299] : memref<80xf32, #tpu.memory_space<smem>>
    %1142 = vector.broadcast %1141 : f32 to vector<8x128xf32>
    %1143 = arith.addf %1140, %1142 : vector<8x128xf32>
    %cst_300 = arith.constant 0.000000e+00 : f32
    %1144 = vector.broadcast %cst_300 : f32 to vector<8x128xf32>
    %1145 = arith.maximumf %1143, %1144 : vector<8x128xf32>
    %1146 = vector.broadcast %1137 : f32 to vector<8x128xf32>
    %1147 = arith.mulf %1146, %1145 : vector<8x128xf32>
    %1148 = arith.addf %1136, %1147 : vector<8x128xf32>
    %c79 = arith.constant 79 : index
    %1149 = memref.load %arg5[%c79] : memref<80xf32, #tpu.memory_space<smem>>
    %c79_301 = arith.constant 79 : index
    %1150 = memref.load %arg3[%c79_301] : memref<80xf32, #tpu.memory_space<smem>>
    %1151 = vector.broadcast %1150 : f32 to vector<8x128xf32>
    %1152 = arith.mulf %1151, %958 : vector<8x128xf32>
    %c79_302 = arith.constant 79 : index
    %1153 = memref.load %arg4[%c79_302] : memref<80xf32, #tpu.memory_space<smem>>
    %1154 = vector.broadcast %1153 : f32 to vector<8x128xf32>
    %1155 = arith.addf %1152, %1154 : vector<8x128xf32>
    %cst_303 = arith.constant 0.000000e+00 : f32
    %1156 = vector.broadcast %cst_303 : f32 to vector<8x128xf32>
    %1157 = arith.maximumf %1155, %1156 : vector<8x128xf32>
    %1158 = vector.broadcast %1149 : f32 to vector<8x128xf32>
    %1159 = arith.mulf %1158, %1157 : vector<8x128xf32>
    %1160 = arith.addf %1148, %1159 : vector<8x128xf32>
    %1161 = arith.addf %1019, %1066 : vector<8x128xf32>
    %1162 = arith.addf %1113, %1160 : vector<8x128xf32>
    %1163 = arith.addf %1161, %1162 : vector<8x128xf32>
    %1164 = arith.subf %958, %951 : vector<8x128xf32>
    %1165 = math.absf %1164 : vector<8x128xf32>
    %cst_304 = arith.constant 0.000000e+00 : f32
    %1166 = vector.broadcast %cst_304 : f32 to vector<8x128xf32>
    %1167 = arith.subf %1166, %1165 : vector<8x128xf32>
    %1168 = math.exp %1167 : vector<8x128xf32>
    %cst_305 = arith.constant 1.000000e+00 : f32
    %1169 = vector.broadcast %cst_305 : f32 to vector<8x128xf32>
    %1170 = arith.addf %1169, %1168 : vector<8x128xf32>
    %1171 = tpu.reciprocal %1170 {approx = true} : vector<8x128xf32> -> vector<8x128xf32>
    %cst_306 = arith.constant 0.000000e+00 : f32
    %1172 = vector.broadcast %cst_306 : f32 to vector<8x128xf32>
    %1173 = arith.cmpf oge, %1164, %1172 : vector<8x128xf32>
    %1174 = arith.mulf %1168, %1171 : vector<8x128xf32>
    %1175 = arith.select %1173, %1171, %1174 : vector<8x128xi1>, vector<8x128xf32>
    %cst_307 = arith.constant 1.000000e+00 : f32
    %1176 = vector.broadcast %cst_307 : f32 to vector<8x128xf32>
    %1177 = arith.subf %1176, %1175 : vector<8x128xf32>
    %1178 = arith.subf %972, %4 : f32
    %cst_308 = arith.constant 1.000000e-03 : f32
    %1179 = arith.mulf %cst_308, %1178 : f32
    %1180 = arith.addf %971, %1179 : f32
    %c4_309 = arith.constant 4 : index
    %1181 = memref.load %arg6[%c4_309] : memref<5xf32, #tpu.memory_space<smem>>
    %1182 = arith.subf %1181, %1180 : f32
    %1183 = vector.broadcast %1182 : f32 to vector<8x128xf32>
    %1184 = arith.addf %1163, %1183 : vector<8x128xf32>
    %1185 = arith.mulf %8, %1177 : vector<8x128xf32>
    %1186 = arith.subf %1184, %1185 : vector<8x128xf32>
    %cst_310 = arith.constant 1.000000e+00 : f32
    %1187 = vector.broadcast %cst_310 : f32 to vector<8x128xf32>
    %1188 = arith.mulf %1187, %951 : vector<8x128xf32>
    %1189 = arith.addf %1186, %1188 : vector<8x128xf32>
    %cst_311 = arith.constant 5.000000e-01 : f32
    %1190 = vector.broadcast %cst_311 : f32 to vector<8x128xf32>
    %1191 = arith.mulf %1189, %1190 : vector<8x128xf32>
    %1192 = arith.mulf %10, %1175 : vector<8x128xf32>
    %1193 = arith.subf %1184, %1192 : vector<8x128xf32>
    %cst_312 = arith.constant 1.000000e+00 : f32
    %1194 = vector.broadcast %cst_312 : f32 to vector<8x128xf32>
    %1195 = arith.mulf %1194, %958 : vector<8x128xf32>
    %1196 = arith.addf %1193, %1195 : vector<8x128xf32>
    %cst_313 = arith.constant 5.000000e-01 : f32
    %1197 = vector.broadcast %cst_313 : f32 to vector<8x128xf32>
    %1198 = arith.mulf %1196, %1197 : vector<8x128xf32>
    %c0_314 = arith.constant 0 : index
    %c0_315 = arith.constant 0 : index
    %c0_316 = arith.constant 0 : index
    %1199 = vector.load %arg8[%c0_314, %c0_315, %c0_316] : memref<2x8x128xf32, #tpu.memory_space<vmem>>, vector<1x8x128xf32>
    %1200 = vector.shape_cast %1199 : vector<1x8x128xf32> to vector<8x128xf32>
    %1201 = vector.shape_cast %1191 : vector<8x128xf32> to vector<1x8x128xf32>
    tpu.vector_store %arg8[%c0_314, %c0_315, %c0_316], %1201 {strides = array<i32>} : memref<2x8x128xf32, #tpu.memory_space<vmem>>, vector<1x8x128xf32>,
    %c1_317 = arith.constant 1 : index
    %c0_318 = arith.constant 0 : index
    %c0_319 = arith.constant 0 : index
    %1202 = vector.load %arg8[%c1_317, %c0_318, %c0_319] : memref<2x8x128xf32, #tpu.memory_space<vmem>>, vector<1x8x128xf32>
    %1203 = vector.shape_cast %1202 : vector<1x8x128xf32> to vector<8x128xf32>
    %1204 = vector.shape_cast %1198 : vector<8x128xf32> to vector<1x8x128xf32>
    tpu.vector_store %arg8[%c1_317, %c0_318, %c0_319], %1204 {strides = array<i32>} : memref<2x8x128xf32, #tpu.memory_space<vmem>>, vector<1x8x128xf32>,
    return
  }
}

</mosaic_0001>

<llo_original>
// kernel: tpu_custom_call.1
$region0: #{tpu_custom_call.1}
  #allocation0 [shape = 'u32[]', space=smem, size = 0x4, offset = 0x4, fixed_abs, tag = 'smem constant byte address 0x4 - core index']
  #allocation1 [shape = 'u32[144,128]{1,0:T(1,128)}', space=vmem, size = 0x12000, scoped, tag = 'internal scratch']
  %s0 = inlined_call_operand.hbm [shape: f32[8,128], index: 0, kind: input, shape index: {}]
  %s1 = inlined_call_operand.hbm [shape: f32[8,128], index: 1, kind: input, shape index: {}]
  %s2 = inlined_call_operand.hbm [shape: f32[8,128], index: 2, kind: input, shape index: {}]
  %s3 = inlined_call_operand.vmem [shape: f32[80], index: 3, kind: input, shape index: {}]
  %s4 = inlined_call_operand.vmem [shape: f32[80], index: 4, kind: input, shape index: {}]
  %s5 = inlined_call_operand.vmem [shape: f32[80], index: 5, kind: input, shape index: {}]
  %s6 = inlined_call_operand.vmem [shape: f32[5], index: 6, kind: input, shape index: {}]
  %s7 = inlined_call_operand.vmem [shape: f32[2], index: 7, kind: input, shape index: {}]
  %s8 = inlined_call_operand.hbm [shape: f32[2,8,128], index: 8, kind: output, shape index: {}]
  %s9 = sld [smem:[#allocation0]]
  $region74: #{tpu_custom_call.1} parent=0
    _
  %s11 = ssub.s32 1, %s9
  %s12 = scalar_select 0, %s11, %s9
  $region1: #{tpu_custom_call.1} parent=0
    #allocation2 [shape = 'u8[4096]{0}', space=vmem, size = 0x1000, scoped, tag = 'input window, operand 0, single buffered']
    #allocation3 [shape = 's32[1]{0}', space=sflag, size = 0x4, scoped, tag = 'scoped memory for tpu_custom_call.1']
    #allocation4 [shape = 's32[1]{0}', space=sflag, size = 0x4, scoped, tag = 'scoped memory for tpu_custom_call.1']
    #allocation5 [shape = 's32[1]{0}', space=sflag, size = 0x4, scoped, tag = 'scoped memory for tpu_custom_call.1']
    #allocation6 [shape = 'u8[4096]{0}', space=vmem, size = 0x1000, scoped, tag = 'input window, operand 1, single buffered']
    #allocation7 [shape = 's32[1]{0}', space=sflag, size = 0x4, scoped, tag = 'scoped memory for tpu_custom_call.1']
    #allocation8 [shape = 'u8[4096]{0}', space=vmem, size = 0x1000, scoped, tag = 'input window, operand 2, single buffered']
    #allocation9 [shape = 'u8[512]{0}', space=smem, size = 0x200, scoped, tag = 'input window, operand 3, single buffered']
    #allocation10 [shape = 'u8[512]{0}', space=smem, size = 0x200, scoped, tag = 'input window, operand 4, single buffered']
    #allocation11 [shape = 's32[1]{0}', space=sflag, size = 0x4, scoped, tag = 'scoped memory for tpu_custom_call.1']
    #allocation12 [shape = 'u8[512]{0}', space=smem, size = 0x200, scoped, tag = 'input window, operand 5, single buffered']
    #allocation13 [shape = 'u8[512]{0}', space=smem, size = 0x200, scoped, tag = 'input window, operand 6, single buffered']
    #allocation14 [shape = 's32[1]{0}', space=sflag, size = 0x4, scoped, tag = 'scoped memory for tpu_custom_call.1']
    #allocation15 [shape = 'u8[512]{0}', space=smem, size = 0x200, scoped, tag = 'input window, operand 7, single buffered']
    #allocation16 [shape = 'u8[8192]{0}', space=vmem, size = 0x2000, scoped, tag = 'output window, operand 0, single buffered']
    %13 = vsyncpa [#allocation3], 0
    %14 = vsyncpa [#allocation7], 0
    %15 = vsyncpa [#allocation5], 0
    %16 = vsyncpa [#allocation11], 0
    %17 = vsyncpa [#allocation14], 0
    %18 = vsyncpa [#allocation4], 0
    // Predicated region
    $region2: #{tpu_custom_call.1} parent=1 // pred_check
      _
    $region3: #{tpu_custom_call.1} parent=1 // pred_check_branch
      %20 = sbr.rel (0) target = $region5
    $region4: #{tpu_custom_call.1} parent=1 // pred_region
      %s22 = ssub.s32 128, 128
      %23 = vsyncadd [#allocation3], %s22
      %s25 = sshll.u32 [#allocation2], 4
      %s26 = int_to_ptr.vmem [resolvable:$true] %s25
      %28 = dma.hbm_to_vmem [thread:$0]  %s0, 128, %s26, [#allocation3]
    $region5: #{tpu_custom_call.1} parent=1 // pred_fallthru
      _
    // Predicated region
    $region6: #{tpu_custom_call.1} parent=1 // pred_check
      _
    $region7: #{tpu_custom_call.1} parent=1 // pred_check_branch
      %30 = sbr.rel (0) target = $region9
    $region8: #{tpu_custom_call.1} parent=1 // pred_region
      %s32 = ssub.s32 128, 128
      %33 = vsyncadd [#allocation7], %s32
      %s35 = sshll.u32 [#allocation6], 4
      %s36 = int_to_ptr.vmem [resolvable:$true] %s35
      %38 = dma.hbm_to_vmem [thread:$0]  %s1, 128, %s36, [#allocation7]
    $region9: #{tpu_custom_call.1} parent=1 // pred_fallthru
      _
    // Predicated region
    $region10: #{tpu_custom_call.1} parent=1 // pred_check
      _
    $region11: #{tpu_custom_call.1} parent=1 // pred_check_branch
      %40 = sbr.rel (0) target = $region13
    $region12: #{tpu_custom_call.1} parent=1 // pred_region
      %s42 = ssub.s32 128, 128
      %43 = vsyncadd [#allocation7], %s42
      %s45 = sshll.u32 [#allocation8], 4
      %s46 = int_to_ptr.vmem [resolvable:$true] %s45
      %48 = dma.hbm_to_vmem [thread:$0]  %s2, 128, %s46, [#allocation7]
    $region13: #{tpu_custom_call.1} parent=1 // pred_fallthru
      _
    // Predicated region
    $region14: #{tpu_custom_call.1} parent=1 // pred_check
      _
    $region15: #{tpu_custom_call.1} parent=1 // pred_check_branch
      %50 = sbr.rel (0) target = $region17
    $region16: #{tpu_custom_call.1} parent=1 // pred_region
      %s52 = ssub.s32 16, 16
      %53 = vsyncadd [#allocation5], %s52
      %s55 = sshll.u32 %s3, 4
      %s56 = int_to_ptr.vmem [resolvable:$true] %s55
      %58 = dma.vmem_to_smem %s56, 16, [#allocation9], [#allocation5]
    $region17: #{tpu_custom_call.1} parent=1 // pred_fallthru
      _
    // Predicated region
    $region18: #{tpu_custom_call.1} parent=1 // pred_check
      _
    $region19: #{tpu_custom_call.1} parent=1 // pred_check_branch
      %60 = sbr.rel (0) target = $region21
    $region20: #{tpu_custom_call.1} parent=1 // pred_region
      %s62 = ssub.s32 16, 16
      %63 = vsyncadd [#allocation11], %s62
      %s65 = sshll.u32 %s4, 4
      %s66 = int_to_ptr.vmem [resolvable:$true] %s65
      %68 = dma.vmem_to_smem %s66, 16, [#allocation10], [#allocation11]
    $region21: #{tpu_custom_call.1} parent=1 // pred_fallthru
      _
    // Predicated region
    $region22: #{tpu_custom_call.1} parent=1 // pred_check
      _
    $region23: #{tpu_custom_call.1} parent=1 // pred_check_branch
      %70 = sbr.rel (0) target = $region25
    $region24: #{tpu_custom_call.1} parent=1 // pred_region
      %s72 = ssub.s32 16, 16
      %73 = vsyncadd [#allocation11], %s72
      %s75 = sshll.u32 %s5, 4
      %s76 = int_to_ptr.vmem [resolvable:$true] %s75
      %78 = dma.vmem_to_smem %s76, 16, [#allocation12], [#allocation11]
    $region25: #{tpu_custom_call.1} parent=1 // pred_fallthru
      _
    // Predicated region
    $region26: #{tpu_custom_call.1} parent=1 // pred_check
      _
    $region27: #{tpu_custom_call.1} parent=1 // pred_check_branch
      %80 = sbr.rel (0) target = $region29
    $region28: #{tpu_custom_call.1} parent=1 // pred_region
      %s82 = ssub.s32 16, 16
      %83 = vsyncadd [#allocation14], %s82
      %s85 = sshll.u32 %s6, 4
      %s86 = int_to_ptr.vmem [resolvable:$true] %s85
      %88 = dma.vmem_to_smem %s86, 16, [#allocation13], [#allocation14]
    $region29: #{tpu_custom_call.1} parent=1 // pred_fallthru
      _
    // Predicated region
    $region30: #{tpu_custom_call.1} parent=1 // pred_check
      _
    $region31: #{tpu_custom_call.1} parent=1 // pred_check_branch
      %90 = sbr.rel (0) target = $region33
    $region32: #{tpu_custom_call.1} parent=1 // pred_region
      %s92 = ssub.s32 16, 16
      %93 = vsyncadd [#allocation14], %s92
      %s95 = sshll.u32 %s7, 4
      %s96 = int_to_ptr.vmem [resolvable:$true] %s95
      %98 = dma.vmem_to_smem %s96, 16, [#allocation15], [#allocation14]
    $region33: #{tpu_custom_call.1} parent=1 // pred_fallthru
      _
    // Predicated region
    $region34: #{tpu_custom_call.1} parent=1 // pred_check
      _
    $region35: #{tpu_custom_call.1} parent=1 // pred_check_branch
      %100 = sbr.rel (0) target = $region37
    $region36: #{tpu_custom_call.1} parent=1 // pred_region
      %101 = dma.done [#allocation3], 128
    $region37: #{tpu_custom_call.1} parent=1 // pred_fallthru
      _
    // Predicated region
    $region38: #{tpu_custom_call.1} parent=1 // pred_check
      _
    $region39: #{tpu_custom_call.1} parent=1 // pred_check_branch
      %103 = sbr.rel (0) target = $region41
    $region40: #{tpu_custom_call.1} parent=1 // pred_region
      %104 = dma.done [#allocation7], 128
    $region41: #{tpu_custom_call.1} parent=1 // pred_fallthru
      _
    // Predicated region
    $region42: #{tpu_custom_call.1} parent=1 // pred_check
      _
    $region43: #{tpu_custom_call.1} parent=1 // pred_check_branch
      %106 = sbr.rel (0) target = $region45
    $region44: #{tpu_custom_call.1} parent=1 // pred_region
      %107 = dma.done [#allocation7], 128
    $region45: #{tpu_custom_call.1} parent=1 // pred_fallthru
      _
    // Predicated region
    $region46: #{tpu_custom_call.1} parent=1 // pred_check
      _
    $region47: #{tpu_custom_call.1} parent=1 // pred_check_branch
      %109 = sbr.rel (0) target = $region49
    $region48: #{tpu_custom_call.1} parent=1 // pred_region
      %110 = dma.done [#allocation5], 16
    $region49: #{tpu_custom_call.1} parent=1 // pred_fallthru
      _
    // Predicated region
    $region50: #{tpu_custom_call.1} parent=1 // pred_check
      _
    $region51: #{tpu_custom_call.1} parent=1 // pred_check_branch
      %112 = sbr.rel (0) target = $region53
    $region52: #{tpu_custom_call.1} parent=1 // pred_region
      %113 = dma.done [#allocation11], 16
    $region53: #{tpu_custom_call.1} parent=1 // pred_fallthru
      _
    // Predicated region
    $region54: #{tpu_custom_call.1} parent=1 // pred_check
      _
    $region55: #{tpu_custom_call.1} parent=1 // pred_check_branch
      %115 = sbr.rel (0) target = $region57
    $region56: #{tpu_custom_call.1} parent=1 // pred_region
      %116 = dma.done [#allocation11], 16
    $region57: #{tpu_custom_call.1} parent=1 // pred_fallthru
      _
    // Predicated region
    $region58: #{tpu_custom_call.1} parent=1 // pred_check
      _
    $region59: #{tpu_custom_call.1} parent=1 // pred_check_branch
      %118 = sbr.rel (0) target = $region61
    $region60: #{tpu_custom_call.1} parent=1 // pred_region
      %119 = dma.done [#allocation14], 16
    $region61: #{tpu_custom_call.1} parent=1 // pred_fallthru
      _
    // Predicated region
    $region62: #{tpu_custom_call.1} parent=1 // pred_check
      _
    $region63: #{tpu_custom_call.1} parent=1 // pred_check_branch
      %121 = sbr.rel (0) target = $region65
    $region64: #{tpu_custom_call.1} parent=1 // pred_region
      %122 = dma.done [#allocation14], 16
    $region65: #{tpu_custom_call.1} parent=1 // pred_fallthru
      _
    %123 = sfence
    %v124 = vld [vmem:[#allocation2] sm:$0xff]
    %v125 = vld [vmem:[#allocation6] sm:$0xff]
    %v126 = vld [vmem:[#allocation8] sm:$0xff]
    %s127 = sld [smem:[#allocation15]]
    %s128 = sld [smem:[#allocation15 + $0x1]]
    %v129 = vsub.f32 1.0, %v125
    %v130 = vmul.f32 %v129, 0.005
    %v131 = vmul.f32 %v125, 0.005
    %v132 = vsub.f32 1.0, %v124
    %s133 = sld [smem:[#allocation12]]
    %s134 = sld [smem:[#allocation9]]
    %v135 = vstv %s134
    %v136 = vmul.f32 %v135, %v124
    %s137 = sld [smem:[#allocation10]]
    %v138 = vstv %s137
    %v139 = vadd.f32 %v136, %v138
    %v140 = vmax.f32 %v139, 0.0
    %v141 = vstv %s133
    %v142 = vmul.f32 %v141, %v140
    %s143 = sld [smem:[#allocation12 + $0x1]]
    %s144 = sld [smem:[#allocation9 + $0x1]]
    %v145 = vstv %s144
    %v146 = vmul.f32 %v145, %v124
    %s147 = sld [smem:[#allocation10 + $0x1]]
    %v148 = vstv %s147
    %v149 = vadd.f32 %v146, %v148
    %v150 = vmax.f32 %v149, 0.0
    %v151 = vstv %s143
    %v152 = vmul.f32 %v151, %v150
    %v153 = vadd.f32 %v142, %v152
    %s154 = sld [smem:[#allocation12 + $0x2]]
    %s155 = sld [smem:[#allocation9 + $0x2]]
    %v156 = vstv %s155
    %v157 = vmul.f32 %v156, %v124
    %s158 = sld [smem:[#allocation10 + $0x2]]
    %v159 = vstv %s158
    %v160 = vadd.f32 %v157, %v159
    %v161 = vmax.f32 %v160, 0.0
    %v162 = vstv %s154
    %v163 = vmul.f32 %v162, %v161
    %v164 = vadd.f32 %v153, %v163
    %s165 = sld [smem:[#allocation12 + $0x3]]
    %s166 = sld [smem:[#allocation9 + $0x3]]
    %v167 = vstv %s166
    %v168 = vmul.f32 %v167, %v124
    %s169 = sld [smem:[#allocation10 + $0x3]]
    %v170 = vstv %s169
    %v171 = vadd.f32 %v168, %v170
    %v172 = vmax.f32 %v171, 0.0
    %v173 = vstv %s165
    %v174 = vmul.f32 %v173, %v172
    %v175 = vadd.f32 %v164, %v174
    %s176 = sld [smem:[#allocation12 + $0x4]]
    %s177 = sld [smem:[#allocation9 + $0x4]]
    %v178 = vstv %s177
    %v179 = vmul.f32 %v178, %v124
    %s180 = sld [smem:[#allocation10 + $0x4]]
    %v181 = vstv %s180
    %v182 = vadd.f32 %v179, %v181
    %v183 = vmax.f32 %v182, 0.0
    %v184 = vstv %s176
    %v185 = vmul.f32 %v184, %v183
    %s186 = sld [smem:[#allocation12 + $0x5]]
    %s187 = sld [smem:[#allocation9 + $0x5]]
    %v188 = vstv %s187
    %v189 = vmul.f32 %v188, %v124
    %s190 = sld [smem:[#allocation10 + $0x5]]
    %v191 = vstv %s190
    %v192 = vadd.f32 %v189, %v191
    %v193 = vmax.f32 %v192, 0.0
    %v194 = vstv %s186
    %v195 = vmul.f32 %v194, %v193
    %v196 = vadd.f32 %v185, %v195
    %s197 = sld [smem:[#allocation12 + $0x6]]
    %s198 = sld [smem:[#allocation9 + $0x6]]
    %v199 = vstv %s198
    %v200 = vmul.f32 %v199, %v124
    %s201 = sld [smem:[#allocation10 + $0x6]]
    %v202 = vstv %s201
    %v203 = vadd.f32 %v200, %v202
    %v204 = vmax.f32 %v203, 0.0
    %v205 = vstv %s197
    %v206 = vmul.f32 %v205, %v204
    %v207 = vadd.f32 %v196, %v206
    %s208 = sld [smem:[#allocation12 + $0x7]]
    %s209 = sld [smem:[#allocation9 + $0x7]]
    %v210 = vstv %s209
    %v211 = vmul.f32 %v210, %v124
    %s212 = sld [smem:[#allocation10 + $0x7]]
    %v213 = vstv %s212
    %v214 = vadd.f32 %v211, %v213
    %v215 = vmax.f32 %v214, 0.0
    %v216 = vstv %s208
    %v217 = vmul.f32 %v216, %v215
    %v218 = vadd.f32 %v207, %v217
    %s219 = sld [smem:[#allocation12 + $0x8]]
    %s220 = sld [smem:[#allocation9 + $0x8]]
    %v221 = vstv %s220
    %v222 = vmul.f32 %v221, %v124
    %s223 = sld [smem:[#allocation10 + $0x8]]
    %v224 = vstv %s223
    %v225 = vadd.f32 %v222, %v224
    %v226 = vmax.f32 %v225, 0.0
    %v227 = vstv %s219
    %v228 = vmul.f32 %v227, %v226
    %s229 = sld [smem:[#allocation12 + $0x9]]
    %s230 = sld [smem:[#allocation9 + $0x9]]
    %v231 = vstv %s230
    %v232 = vmul.f32 %v231, %v124
    %s233 = sld [smem:[#allocation10 + $0x9]]
    %v234 = vstv %s233
    %v235 = vadd.f32 %v232, %v234
    %v236 = vmax.f32 %v235, 0.0
    %v237 = vstv %s229
    %v238 = vmul.f32 %v237, %v236
    %v239 = vadd.f32 %v228, %v238
    %s240 = sld [smem:[#allocation12 + $0xa]]
    %s241 = sld [smem:[#allocation9 + $0xa]]
    %v242 = vstv %s241
    %v243 = vmul.f32 %v242, %v124
    %s244 = sld [smem:[#allocation10 + $0xa]]
    %v245 = vstv %s244
    %v246 = vadd.f32 %v243, %v245
    %v247 = vmax.f32 %v246, 0.0
    %v248 = vstv %s240
    %v249 = vmul.f32 %v248, %v247
    %v250 = vadd.f32 %v239, %v249
    %s251 = sld [smem:[#allocation12 + $0xb]]
    %s252 = sld [smem:[#allocation9 + $0xb]]
    %v253 = vstv %s252
    %v254 = vmul.f32 %v253, %v124
    %s255 = sld [smem:[#allocation10 + $0xb]]
    %v256 = vstv %s255
    %v257 = vadd.f32 %v254, %v256
    %v258 = vmax.f32 %v257, 0.0
    %v259 = vstv %s251
    %v260 = vmul.f32 %v259, %v258
    %v261 = vadd.f32 %v250, %v260
    %s262 = sld [smem:[#allocation12 + $0xc]]
    %s263 = sld [smem:[#allocation9 + $0xc]]
    %v264 = vstv %s263
    %v265 = vmul.f32 %v264, %v124
    %s266 = sld [smem:[#allocation10 + $0xc]]
    %v267 = vstv %s266
    %v268 = vadd.f32 %v265, %v267
    %v269 = vmax.f32 %v268, 0.0
    %v270 = vstv %s262
    %v271 = vmul.f32 %v270, %v269
    %s272 = sld [smem:[#allocation12 + $0xd]]
    %s273 = sld [smem:[#allocation9 + $0xd]]
    %v274 = vstv %s273
    %v275 = vmul.f32 %v274, %v124
    %s276 = sld [smem:[#allocation10 + $0xd]]
    %v277 = vstv %s276
    %v278 = vadd.f32 %v275, %v277
    %v279 = vmax.f32 %v278, 0.0
    %v280 = vstv %s272
    %v281 = vmul.f32 %v280, %v279
    %v282 = vadd.f32 %v271, %v281
    %s283 = sld [smem:[#allocation12 + $0xe]]
    %s284 = sld [smem:[#allocation9 + $0xe]]
    %v285 = vstv %s284
    %v286 = vmul.f32 %v285, %v124
    %s287 = sld [smem:[#allocation10 + $0xe]]
    %v288 = vstv %s287
    %v289 = vadd.f32 %v286, %v288
    %v290 = vmax.f32 %v289, 0.0
    %v291 = vstv %s283
    %v292 = vmul.f32 %v291, %v290
    %v293 = vadd.f32 %v282, %v292
    %s294 = sld [smem:[#allocation12 + $0xf]]
    %s295 = sld [smem:[#allocation9 + $0xf]]
    %v296 = vstv %s295
    %v297 = vmul.f32 %v296, %v124
    %s298 = sld [smem:[#allocation10 + $0xf]]
    %v299 = vstv %s298
    %v300 = vadd.f32 %v297, %v299
    %v301 = vmax.f32 %v300, 0.0
    %v302 = vstv %s294
    %v303 = vmul.f32 %v302, %v301
    %v304 = vadd.f32 %v293, %v303
    %v305 = vadd.f32 %v175, %v218
    %v306 = vadd.f32 %v261, %v304
    %v307 = vadd.f32 %v305, %v306
    %v308 = vsub.f32 %v124, %v132
    %v309 = vand.u32 2147483647, %v308
    %v310 = vsub.f32 0.0, %v309
    %v311 = vmul.f32 %v310, 1.442695
    %v312 = vpow.pop %v311
    %v313 = vadd.f32 %v312, 1.0
    %v314 = vrcp.pop %v313
    %vm315 = vcmp.ge.f32.partialorder %v308, 0.0
    %v316 = vmul.f32 %v312, %v314
    %v317 = vsel %vm315, %v314, %v316
    %v318 = vsub.f32 1.0, %v317
    %s319 = ssub.f32 200.0, %s128
    %s320 = smul.f32 %s319, 0.001
    %s321 = sadd.f32 %s127, %s320
    %s322 = sld [smem:[#allocation13]]
    %s323 = ssub.f32 %s322, %s321
    %v324 = vstv %s323
    %v325 = vadd.f32 %v307, %v324
    %v326 = vmul.f32 %v130, %v318
    %v327 = vsub.f32 %v325, %v326
    %v328 = vadd.f32 %v327, %v132
    %v329 = vmul.f32 %v328, 0.5
    %v330 = vmul.f32 %v131, %v317
    %v331 = vsub.f32 %v325, %v330
    %v332 = vadd.f32 %v331, %v124
    %v333 = vmul.f32 %v332, 0.5
    %v334 = vmul.f32 %v329, %v126
    %335 = vadd.xlane.f32.xlu0 %v334
    %v336 = vpop.xlane.xlu0 %335
    %v337 = vrot.slane %v336, 4
    %v338 = vadd.f32 %v336, %v337
    %v339 = vrot.slane %v338, 2
    %v340 = vadd.f32 %v338, %v339
    %v341 = vrot.slane %v340, 1
    %v342 = vadd.f32 %v340, %v341
    %s343 = vtos %v342
    %v344 = vmul.f32 %v333, %v126
    %345 = vadd.xlane.f32.xlu0 %v344
    %v346 = vpop.xlane.xlu0 %345
    %v347 = vrot.slane %v346, 4
    %v348 = vadd.f32 %v346, %v347
    %v349 = vrot.slane %v348, 2
    %v350 = vadd.f32 %v348, %v349
    %v351 = vrot.slane %v350, 1
    %v352 = vadd.f32 %v350, %v351
    %s353 = vtos %v352
    %s354 = ssub.f32 %s353, %s128
    %s355 = smul.f32 %s354, 0.001
    %s356 = sadd.f32 %s127, %s355
    %s357 = sadd.f32 %s343, %s353
    %s358 = sld [smem:[#allocation12 + $0x10]]
    %s359 = sld [smem:[#allocation9 + $0x10]]
    %v360 = vstv %s359
    %v361 = vmul.f32 %v360, %v333
    %s362 = sld [smem:[#allocation10 + $0x10]]
    %v363 = vstv %s362
    %v364 = vadd.f32 %v361, %v363
    %v365 = vmax.f32 %v364, 0.0
    %v366 = vstv %s358
    %v367 = vmul.f32 %v366, %v365
    %s368 = sld [smem:[#allocation12 + $0x11]]
    %s369 = sld [smem:[#allocation9 + $0x11]]
    %v370 = vstv %s369
    %v371 = vmul.f32 %v370, %v333
    %s372 = sld [smem:[#allocation10 + $0x11]]
    %v373 = vstv %s372
    %v374 = vadd.f32 %v371, %v373
    %v375 = vmax.f32 %v374, 0.0
    %v376 = vstv %s368
    %v377 = vmul.f32 %v376, %v375
    %v378 = vadd.f32 %v367, %v377
    %s379 = sld [smem:[#allocation12 + $0x12]]
    %s380 = sld [smem:[#allocation9 + $0x12]]
    %v381 = vstv %s380
    %v382 = vmul.f32 %v381, %v333
    %s383 = sld [smem:[#allocation10 + $0x12]]
    %v384 = vstv %s383
    %v385 = vadd.f32 %v382, %v384
    %v386 = vmax.f32 %v385, 0.0
    %v387 = vstv %s379
    %v388 = vmul.f32 %v387, %v386
    %v389 = vadd.f32 %v378, %v388
    %s390 = sld [smem:[#allocation12 + $0x13]]
    %s391 = sld [smem:[#allocation9 + $0x13]]
    %v392 = vstv %s391
    %v393 = vmul.f32 %v392, %v333
    %s394 = sld [smem:[#allocation10 + $0x13]]
    %v395 = vstv %s394
    %v396 = vadd.f32 %v393, %v395
    %v397 = vmax.f32 %v396, 0.0
    %v398 = vstv %s390
    %v399 = vmul.f32 %v398, %v397
    %v400 = vadd.f32 %v389, %v399
    %s401 = sld [smem:[#allocation12 + $0x14]]
    %s402 = sld [smem:[#allocation9 + $0x14]]
    %v403 = vstv %s402
    %v404 = vmul.f32 %v403, %v333
    %s405 = sld [smem:[#allocation10 + $0x14]]
    %v406 = vstv %s405
    %v407 = vadd.f32 %v404, %v406
    %v408 = vmax.f32 %v407, 0.0
    %v409 = vstv %s401
    %v410 = vmul.f32 %v409, %v408
    %s411 = sld [smem:[#allocation12 + $0x15]]
    %s412 = sld [smem:[#allocation9 + $0x15]]
    %v413 = vstv %s412
    %v414 = vmul.f32 %v413, %v333
    %s415 = sld [smem:[#allocation10 + $0x15]]
    %v416 = vstv %s415
    %v417 = vadd.f32 %v414, %v416
    %v418 = vmax.f32 %v417, 0.0
    %v419 = vstv %s411
    %v420 = vmul.f32 %v419, %v418
    %v421 = vadd.f32 %v410, %v420
    %s422 = sld [smem:[#allocation12 + $0x16]]
    %s423 = sld [smem:[#allocation9 + $0x16]]
    %v424 = vstv %s423
    %v425 = vmul.f32 %v424, %v333
    %s426 = sld [smem:[#allocation10 + $0x16]]
    %v427 = vstv %s426
    %v428 = vadd.f32 %v425, %v427
    %v429 = vmax.f32 %v428, 0.0
    %v430 = vstv %s422
    %v431 = vmul.f32 %v430, %v429
    %v432 = vadd.f32 %v421, %v431
    %s433 = sld [smem:[#allocation12 + $0x17]]
    %s434 = sld [smem:[#allocation9 + $0x17]]
    %v435 = vstv %s434
    %v436 = vmul.f32 %v435, %v333
    %s437 = sld [smem:[#allocation10 + $0x17]]
    %v438 = vstv %s437
    %v439 = vadd.f32 %v436, %v438
    %v440 = vmax.f32 %v439, 0.0
    %v441 = vstv %s433
    %v442 = vmul.f32 %v441, %v440
    %v443 = vadd.f32 %v432, %v442
    %s444 = sld [smem:[#allocation12 + $0x18]]
    %s445 = sld [smem:[#allocation9 + $0x18]]
    %v446 = vstv %s445
    %v447 = vmul.f32 %v446, %v333
    %s448 = sld [smem:[#allocation10 + $0x18]]
    %v449 = vstv %s448
    %v450 = vadd.f32 %v447, %v449
    %v451 = vmax.f32 %v450, 0.0
    %v452 = vstv %s444
    %v453 = vmul.f32 %v452, %v451
    %s454 = sld [smem:[#allocation12 + $0x19]]
    %s455 = sld [smem:[#allocation9 + $0x19]]
    %v456 = vstv %s455
    %v457 = vmul.f32 %v456, %v333
    %s458 = sld [smem:[#allocation10 + $0x19]]
    %v459 = vstv %s458
    %v460 = vadd.f32 %v457, %v459
    %v461 = vmax.f32 %v460, 0.0
    %v462 = vstv %s454
    %v463 = vmul.f32 %v462, %v461
    %v464 = vadd.f32 %v453, %v463
    %s465 = sld [smem:[#allocation12 + $0x1a]]
    %s466 = sld [smem:[#allocation9 + $0x1a]]
    %v467 = vstv %s466
    %v468 = vmul.f32 %v467, %v333
    %s469 = sld [smem:[#allocation10 + $0x1a]]
    %v470 = vstv %s469
    %v471 = vadd.f32 %v468, %v470
    %v472 = vmax.f32 %v471, 0.0
    %v473 = vstv %s465
    %v474 = vmul.f32 %v473, %v472
    %v475 = vadd.f32 %v464, %v474
    %s476 = sld [smem:[#allocation12 + $0x1b]]
    %s477 = sld [smem:[#allocation9 + $0x1b]]
    %v478 = vstv %s477
    %v479 = vmul.f32 %v478, %v333
    %s480 = sld [smem:[#allocation10 + $0x1b]]
    %v481 = vstv %s480
    %v482 = vadd.f32 %v479, %v481
    %v483 = vmax.f32 %v482, 0.0
    %v484 = vstv %s476
    %v485 = vmul.f32 %v484, %v483
    %v486 = vadd.f32 %v475, %v485
    %s487 = sld [smem:[#allocation12 + $0x1c]]
    %s488 = sld [smem:[#allocation9 + $0x1c]]
    %v489 = vstv %s488
    %v490 = vmul.f32 %v489, %v333
    %s491 = sld [smem:[#allocation10 + $0x1c]]
    %v492 = vstv %s491
    %v493 = vadd.f32 %v490, %v492
    %v494 = vmax.f32 %v493, 0.0
    %v495 = vstv %s487
    %v496 = vmul.f32 %v495, %v494
    %s497 = sld [smem:[#allocation12 + $0x1d]]
    %s498 = sld [smem:[#allocation9 + $0x1d]]
    %v499 = vstv %s498
    %v500 = vmul.f32 %v499, %v333
    %s501 = sld [smem:[#allocation10 + $0x1d]]
    %v502 = vstv %s501
    %v503 = vadd.f32 %v500, %v502
    %v504 = vmax.f32 %v503, 0.0
    %v505 = vstv %s497
    %v506 = vmul.f32 %v505, %v504
    %v507 = vadd.f32 %v496, %v506
    %s508 = sld [smem:[#allocation12 + $0x1e]]
    %s509 = sld [smem:[#allocation9 + $0x1e]]
    %v510 = vstv %s509
    %v511 = vmul.f32 %v510, %v333
    %s512 = sld [smem:[#allocation10 + $0x1e]]
    %v513 = vstv %s512
    %v514 = vadd.f32 %v511, %v513
    %v515 = vmax.f32 %v514, 0.0
    %v516 = vstv %s508
    %v517 = vmul.f32 %v516, %v515
    %v518 = vadd.f32 %v507, %v517
    %s519 = sld [smem:[#allocation12 + $0x1f]]
    %s520 = sld [smem:[#allocation9 + $0x1f]]
    %v521 = vstv %s520
    %v522 = vmul.f32 %v521, %v333
    %s523 = sld [smem:[#allocation10 + $0x1f]]
    %v524 = vstv %s523
    %v525 = vadd.f32 %v522, %v524
    %v526 = vmax.f32 %v525, 0.0
    %v527 = vstv %s519
    %v528 = vmul.f32 %v527, %v526
    %v529 = vadd.f32 %v518, %v528
    %v530 = vadd.f32 %v400, %v443
    %v531 = vadd.f32 %v486, %v529
    %v532 = vadd.f32 %v530, %v531
    %v533 = vsub.f32 %v333, %v329
    %v534 = vand.u32 2147483647, %v533
    %v535 = vsub.f32 0.0, %v534
    %v536 = vmul.f32 %v535, 1.442695
    %v537 = vpow.pop %v536
    %v538 = vadd.f32 %v537, 1.0
    %v539 = vrcp.pop %v538
    %vm540 = vcmp.ge.f32.partialorder %v533, 0.0
    %v541 = vmul.f32 %v537, %v539
    %v542 = vsel %vm540, %v539, %v541
    %v543 = vsub.f32 1.0, %v542
    %s544 = ssub.f32 %s357, %s128
    %s545 = smul.f32 %s544, 0.001
    %s546 = sadd.f32 %s356, %s545
    %s547 = sld [smem:[#allocation13 + $0x1]]
    %s548 = ssub.f32 %s547, %s546
    %v549 = vstv %s548
    %v550 = vadd.f32 %v532, %v549
    %v551 = vmul.f32 %v130, %v543
    %v552 = vsub.f32 %v550, %v551
    %v553 = vadd.f32 %v552, %v329
    %v554 = vmul.f32 %v553, 0.5
    %v555 = vmul.f32 %v131, %v542
    %v556 = vsub.f32 %v550, %v555
    %v557 = vadd.f32 %v556, %v333
    %v558 = vmul.f32 %v557, 0.5
    %v559 = vmul.f32 %v554, %v126
    %560 = vadd.xlane.f32.xlu0 %v559
    %v561 = vpop.xlane.xlu0 %560
    %v562 = vrot.slane %v561, 4
    %v563 = vadd.f32 %v561, %v562
    %v564 = vrot.slane %v563, 2
    %v565 = vadd.f32 %v563, %v564
    %v566 = vrot.slane %v565, 1
    %v567 = vadd.f32 %v565, %v566
    %s568 = vtos %v567
    %v569 = vmul.f32 %v558, %v126
    %570 = vadd.xlane.f32.xlu0 %v569
    %v571 = vpop.xlane.xlu0 %570
    %v572 = vrot.slane %v571, 4
    %v573 = vadd.f32 %v571, %v572
    %v574 = vrot.slane %v573, 2
    %v575 = vadd.f32 %v573, %v574
    %v576 = vrot.slane %v575, 1
    %v577 = vadd.f32 %v575, %v576
    %s578 = vtos %v577
    %s579 = ssub.f32 %s578, %s128
    %s580 = smul.f32 %s579, 0.001
    %s581 = sadd.f32 %s356, %s580
    %s582 = sadd.f32 %s568, %s578
    %s583 = sld [smem:[#allocation12 + $0x20]]
    %s584 = sld [smem:[#allocation9 + $0x20]]
    %v585 = vstv %s584
    %v586 = vmul.f32 %v585, %v558
    %s587 = sld [smem:[#allocation10 + $0x20]]
    %v588 = vstv %s587
    %v589 = vadd.f32 %v586, %v588
    %v590 = vmax.f32 %v589, 0.0
    %v591 = vstv %s583
    %v592 = vmul.f32 %v591, %v590
    %s593 = sld [smem:[#allocation12 + $0x21]]
    %s594 = sld [smem:[#allocation9 + $0x21]]
    %v595 = vstv %s594
    %v596 = vmul.f32 %v595, %v558
    %s597 = sld [smem:[#allocation10 + $0x21]]
    %v598 = vstv %s597
    %v599 = vadd.f32 %v596, %v598
    %v600 = vmax.f32 %v599, 0.0
    %v601 = vstv %s593
    %v602 = vmul.f32 %v601, %v600
    %v603 = vadd.f32 %v592, %v602
    %s604 = sld [smem:[#allocation12 + $0x22]]
    %s605 = sld [smem:[#allocation9 + $0x22]]
    %v606 = vstv %s605
    %v607 = vmul.f32 %v606, %v558
    %s608 = sld [smem:[#allocation10 + $0x22]]
    %v609 = vstv %s608
    %v610 = vadd.f32 %v607, %v609
    %v611 = vmax.f32 %v610, 0.0
    %v612 = vstv %s604
    %v613 = vmul.f32 %v612, %v611
    %v614 = vadd.f32 %v603, %v613
    %s615 = sld [smem:[#allocation12 + $0x23]]
    %s616 = sld [smem:[#allocation9 + $0x23]]
    %v617 = vstv %s616
    %v618 = vmul.f32 %v617, %v558
    %s619 = sld [smem:[#allocation10 + $0x23]]
    %v620 = vstv %s619
    %v621 = vadd.f32 %v618, %v620
    %v622 = vmax.f32 %v621, 0.0
    %v623 = vstv %s615
    %v624 = vmul.f32 %v623, %v622
    %v625 = vadd.f32 %v614, %v624
    %s626 = sld [smem:[#allocation12 + $0x24]]
    %s627 = sld [smem:[#allocation9 + $0x24]]
    %v628 = vstv %s627
    %v629 = vmul.f32 %v628, %v558
    %s630 = sld [smem:[#allocation10 + $0x24]]
    %v631 = vstv %s630
    %v632 = vadd.f32 %v629, %v631
    %v633 = vmax.f32 %v632, 0.0
    %v634 = vstv %s626
    %v635 = vmul.f32 %v634, %v633
    %s636 = sld [smem:[#allocation12 + $0x25]]
    %s637 = sld [smem:[#allocation9 + $0x25]]
    %v638 = vstv %s637
    %v639 = vmul.f32 %v638, %v558
    %s640 = sld [smem:[#allocation10 + $0x25]]
    %v641 = vstv %s640
    %v642 = vadd.f32 %v639, %v641
    %v643 = vmax.f32 %v642, 0.0
    %v644 = vstv %s636
    %v645 = vmul.f32 %v644, %v643
    %v646 = vadd.f32 %v635, %v645
    %s647 = sld [smem:[#allocation12 + $0x26]]
    %s648 = sld [smem:[#allocation9 + $0x26]]
    %v649 = vstv %s648
    %v650 = vmul.f32 %v649, %v558
    %s651 = sld [smem:[#allocation10 + $0x26]]
    %v652 = vstv %s651
    %v653 = vadd.f32 %v650, %v652
    %v654 = vmax.f32 %v653, 0.0
    %v655 = vstv %s647
    %v656 = vmul.f32 %v655, %v654
    %v657 = vadd.f32 %v646, %v656
    %s658 = sld [smem:[#allocation12 + $0x27]]
    %s659 = sld [smem:[#allocation9 + $0x27]]
    %v660 = vstv %s659
    %v661 = vmul.f32 %v660, %v558
    %s662 = sld [smem:[#allocation10 + $0x27]]
    %v663 = vstv %s662
    %v664 = vadd.f32 %v661, %v663
    %v665 = vmax.f32 %v664, 0.0
    %v666 = vstv %s658
    %v667 = vmul.f32 %v666, %v665
    %v668 = vadd.f32 %v657, %v667
    %s669 = sld [smem:[#allocation12 + $0x28]]
    %s670 = sld [smem:[#allocation9 + $0x28]]
    %v671 = vstv %s670
    %v672 = vmul.f32 %v671, %v558
    %s673 = sld [smem:[#allocation10 + $0x28]]
    %v674 = vstv %s673
    %v675 = vadd.f32 %v672, %v674
    %v676 = vmax.f32 %v675, 0.0
    %v677 = vstv %s669
    %v678 = vmul.f32 %v677, %v676
    %s679 = sld [smem:[#allocation12 + $0x29]]
    %s680 = sld [smem:[#allocation9 + $0x29]]
    %v681 = vstv %s680
    %v682 = vmul.f32 %v681, %v558
    %s683 = sld [smem:[#allocation10 + $0x29]]
    %v684 = vstv %s683
    %v685 = vadd.f32 %v682, %v684
    %v686 = vmax.f32 %v685, 0.0
    %v687 = vstv %s679
    %v688 = vmul.f32 %v687, %v686
    %v689 = vadd.f32 %v678, %v688
    %s690 = sld [smem:[#allocation12 + $0x2a]]
    %s691 = sld [smem:[#allocation9 + $0x2a]]
    %v692 = vstv %s691
    %v693 = vmul.f32 %v692, %v558
    %s694 = sld [smem:[#allocation10 + $0x2a]]
    %v695 = vstv %s694
    %v696 = vadd.f32 %v693, %v695
    %v697 = vmax.f32 %v696, 0.0
    %v698 = vstv %s690
    %v699 = vmul.f32 %v698, %v697
    %v700 = vadd.f32 %v689, %v699
    %s701 = sld [smem:[#allocation12 + $0x2b]]
    %s702 = sld [smem:[#allocation9 + $0x2b]]
    %v703 = vstv %s702
    %v704 = vmul.f32 %v703, %v558
    %s705 = sld [smem:[#allocation10 + $0x2b]]
    %v706 = vstv %s705
    %v707 = vadd.f32 %v704, %v706
    %v708 = vmax.f32 %v707, 0.0
    %v709 = vstv %s701
    %v710 = vmul.f32 %v709, %v708
    %v711 = vadd.f32 %v700, %v710
    %s712 = sld [smem:[#allocation12 + $0x2c]]
    %s713 = sld [smem:[#allocation9 + $0x2c]]
    %v714 = vstv %s713
    %v715 = vmul.f32 %v714, %v558
    %s716 = sld [smem:[#allocation10 + $0x2c]]
    %v717 = vstv %s716
    %v718 = vadd.f32 %v715, %v717
    %v719 = vmax.f32 %v718, 0.0
    %v720 = vstv %s712
    %v721 = vmul.f32 %v720, %v719
    %s722 = sld [smem:[#allocation12 + $0x2d]]
    %s723 = sld [smem:[#allocation9 + $0x2d]]
    %v724 = vstv %s723
    %v725 = vmul.f32 %v724, %v558
    %s726 = sld [smem:[#allocation10 + $0x2d]]
    %v727 = vstv %s726
    %v728 = vadd.f32 %v725, %v727
    %v729 = vmax.f32 %v728, 0.0
    %v730 = vstv %s722
    %v731 = vmul.f32 %v730, %v729
    %v732 = vadd.f32 %v721, %v731
    %s733 = sld [smem:[#allocation12 + $0x2e]]
    %s734 = sld [smem:[#allocation9 + $0x2e]]
    %v735 = vstv %s734
    %v736 = vmul.f32 %v735, %v558
    %s737 = sld [smem:[#allocation10 + $0x2e]]
    %v738 = vstv %s737
    %v739 = vadd.f32 %v736, %v738
    %v740 = vmax.f32 %v739, 0.0
    %v741 = vstv %s733
    %v742 = vmul.f32 %v741, %v740
    %v743 = vadd.f32 %v732, %v742
    %s744 = sld [smem:[#allocation12 + $0x2f]]
    %s745 = sld [smem:[#allocation9 + $0x2f]]
    %v746 = vstv %s745
    %v747 = vmul.f32 %v746, %v558
    %s748 = sld [smem:[#allocation10 + $0x2f]]
    %v749 = vstv %s748
    %v750 = vadd.f32 %v747, %v749
    %v751 = vmax.f32 %v750, 0.0
    %v752 = vstv %s744
    %v753 = vmul.f32 %v752, %v751
    %v754 = vadd.f32 %v743, %v753
    %v755 = vadd.f32 %v625, %v668
    %v756 = vadd.f32 %v711, %v754
    %v757 = vadd.f32 %v755, %v756
    %v758 = vsub.f32 %v558, %v554
    %v759 = vand.u32 2147483647, %v758
    %v760 = vsub.f32 0.0, %v759
    %v761 = vmul.f32 %v760, 1.442695
    %v762 = vpow.pop %v761
    %v763 = vadd.f32 %v762, 1.0
    %v764 = vrcp.pop %v763
    %vm765 = vcmp.ge.f32.partialorder %v758, 0.0
    %v766 = vmul.f32 %v762, %v764
    %v767 = vsel %vm765, %v764, %v766
    %v768 = vsub.f32 1.0, %v767
    %s769 = ssub.f32 %s582, %s128
    %s770 = smul.f32 %s769, 0.001
    %s771 = sadd.f32 %s581, %s770
    %s772 = sld [smem:[#allocation13 + $0x2]]
    %s773 = ssub.f32 %s772, %s771
    %v774 = vstv %s773
    %v775 = vadd.f32 %v757, %v774
    %v776 = vmul.f32 %v130, %v768
    %v777 = vsub.f32 %v775, %v776
    %v778 = vadd.f32 %v777, %v554
    %v779 = vmul.f32 %v778, 0.5
    %v780 = vmul.f32 %v131, %v767
    %v781 = vsub.f32 %v775, %v780
    %v782 = vadd.f32 %v781, %v558
    %v783 = vmul.f32 %v782, 0.5
    %v784 = vmul.f32 %v779, %v126
    %785 = vadd.xlane.f32.xlu0 %v784
    %v786 = vpop.xlane.xlu0 %785
    %v787 = vrot.slane %v786, 4
    %v788 = vadd.f32 %v786, %v787
    %v789 = vrot.slane %v788, 2
    %v790 = vadd.f32 %v788, %v789
    %v791 = vrot.slane %v790, 1
    %v792 = vadd.f32 %v790, %v791
    %s793 = vtos %v792
    %v794 = vmul.f32 %v783, %v126
    %795 = vadd.xlane.f32.xlu0 %v794
    %v796 = vpop.xlane.xlu0 %795
    %v797 = vrot.slane %v796, 4
    %v798 = vadd.f32 %v796, %v797
    %v799 = vrot.slane %v798, 2
    %v800 = vadd.f32 %v798, %v799
    %v801 = vrot.slane %v800, 1
    %v802 = vadd.f32 %v800, %v801
    %s803 = vtos %v802
    %s804 = ssub.f32 %s803, %s128
    %s805 = smul.f32 %s804, 0.001
    %s806 = sadd.f32 %s581, %s805
    %s807 = sadd.f32 %s793, %s803
    %s808 = sld [smem:[#allocation12 + $0x30]]
    %s809 = sld [smem:[#allocation9 + $0x30]]
    %v810 = vstv %s809
    %v811 = vmul.f32 %v810, %v783
    %s812 = sld [smem:[#allocation10 + $0x30]]
    %v813 = vstv %s812
    %v814 = vadd.f32 %v811, %v813
    %v815 = vmax.f32 %v814, 0.0
    %v816 = vstv %s808
    %v817 = vmul.f32 %v816, %v815
    %s818 = sld [smem:[#allocation12 + $0x31]]
    %s819 = sld [smem:[#allocation9 + $0x31]]
    %v820 = vstv %s819
    %v821 = vmul.f32 %v820, %v783
    %s822 = sld [smem:[#allocation10 + $0x31]]
    %v823 = vstv %s822
    %v824 = vadd.f32 %v821, %v823
    %v825 = vmax.f32 %v824, 0.0
    %v826 = vstv %s818
    %v827 = vmul.f32 %v826, %v825
    %v828 = vadd.f32 %v817, %v827
    %s829 = sld [smem:[#allocation12 + $0x32]]
    %s830 = sld [smem:[#allocation9 + $0x32]]
    %v831 = vstv %s830
    %v832 = vmul.f32 %v831, %v783
    %s833 = sld [smem:[#allocation10 + $0x32]]
    %v834 = vstv %s833
    %v835 = vadd.f32 %v832, %v834
    %v836 = vmax.f32 %v835, 0.0
    %v837 = vstv %s829
    %v838 = vmul.f32 %v837, %v836
    %v839 = vadd.f32 %v828, %v838
    %s840 = sld [smem:[#allocation12 + $0x33]]
    %s841 = sld [smem:[#allocation9 + $0x33]]
    %v842 = vstv %s841
    %v843 = vmul.f32 %v842, %v783
    %s844 = sld [smem:[#allocation10 + $0x33]]
    %v845 = vstv %s844
    %v846 = vadd.f32 %v843, %v845
    %v847 = vmax.f32 %v846, 0.0
    %v848 = vstv %s840
    %v849 = vmul.f32 %v848, %v847
    %v850 = vadd.f32 %v839, %v849
    %s851 = sld [smem:[#allocation12 + $0x34]]
    %s852 = sld [smem:[#allocation9 + $0x34]]
    %v853 = vstv %s852
    %v854 = vmul.f32 %v853, %v783
    %s855 = sld [smem:[#allocation10 + $0x34]]
    %v856 = vstv %s855
    %v857 = vadd.f32 %v854, %v856
    %v858 = vmax.f32 %v857, 0.0
    %v859 = vstv %s851
    %v860 = vmul.f32 %v859, %v858
    %s861 = sld [smem:[#allocation12 + $0x35]]
    %s862 = sld [smem:[#allocation9 + $0x35]]
    %v863 = vstv %s862
    %v864 = vmul.f32 %v863, %v783
    %s865 = sld [smem:[#allocation10 + $0x35]]
    %v866 = vstv %s865
    %v867 = vadd.f32 %v864, %v866
    %v868 = vmax.f32 %v867, 0.0
    %v869 = vstv %s861
    %v870 = vmul.f32 %v869, %v868
    %v871 = vadd.f32 %v860, %v870
    %s872 = sld [smem:[#allocation12 + $0x36]]
    %s873 = sld [smem:[#allocation9 + $0x36]]
    %v874 = vstv %s873
    %v875 = vmul.f32 %v874, %v783
    %s876 = sld [smem:[#allocation10 + $0x36]]
    %v877 = vstv %s876
    %v878 = vadd.f32 %v875, %v877
    %v879 = vmax.f32 %v878, 0.0
    %v880 = vstv %s872
    %v881 = vmul.f32 %v880, %v879
    %v882 = vadd.f32 %v871, %v881
    %s883 = sld [smem:[#allocation12 + $0x37]]
    %s884 = sld [smem:[#allocation9 + $0x37]]
    %v885 = vstv %s884
    %v886 = vmul.f32 %v885, %v783
    %s887 = sld [smem:[#allocation10 + $0x37]]
    %v888 = vstv %s887
    %v889 = vadd.f32 %v886, %v888
    %v890 = vmax.f32 %v889, 0.0
    %v891 = vstv %s883
    %v892 = vmul.f32 %v891, %v890
    %v893 = vadd.f32 %v882, %v892
    %s894 = sld [smem:[#allocation12 + $0x38]]
    %s895 = sld [smem:[#allocation9 + $0x38]]
    %v896 = vstv %s895
    %v897 = vmul.f32 %v896, %v783
    %s898 = sld [smem:[#allocation10 + $0x38]]
    %v899 = vstv %s898
    %v900 = vadd.f32 %v897, %v899
    %v901 = vmax.f32 %v900, 0.0
    %v902 = vstv %s894
    %v903 = vmul.f32 %v902, %v901
    %s904 = sld [smem:[#allocation12 + $0x39]]
    %s905 = sld [smem:[#allocation9 + $0x39]]
    %v906 = vstv %s905
    %v907 = vmul.f32 %v906, %v783
    %s908 = sld [smem:[#allocation10 + $0x39]]
    %v909 = vstv %s908
    %v910 = vadd.f32 %v907, %v909
    %v911 = vmax.f32 %v910, 0.0
    %v912 = vstv %s904
    %v913 = vmul.f32 %v912, %v911
    %v914 = vadd.f32 %v903, %v913
    %s915 = sld [smem:[#allocation12 + $0x3a]]
    %s916 = sld [smem:[#allocation9 + $0x3a]]
    %v917 = vstv %s916
    %v918 = vmul.f32 %v917, %v783
    %s919 = sld [smem:[#allocation10 + $0x3a]]
    %v920 = vstv %s919
    %v921 = vadd.f32 %v918, %v920
    %v922 = vmax.f32 %v921, 0.0
    %v923 = vstv %s915
    %v924 = vmul.f32 %v923, %v922
    %v925 = vadd.f32 %v914, %v924
    %s926 = sld [smem:[#allocation12 + $0x3b]]
    %s927 = sld [smem:[#allocation9 + $0x3b]]
    %v928 = vstv %s927
    %v929 = vmul.f32 %v928, %v783
    %s930 = sld [smem:[#allocation10 + $0x3b]]
    %v931 = vstv %s930
    %v932 = vadd.f32 %v929, %v931
    %v933 = vmax.f32 %v932, 0.0
    %v934 = vstv %s926
    %v935 = vmul.f32 %v934, %v933
    %v936 = vadd.f32 %v925, %v935
    %s937 = sld [smem:[#allocation12 + $0x3c]]
    %s938 = sld [smem:[#allocation9 + $0x3c]]
    %v939 = vstv %s938
    %v940 = vmul.f32 %v939, %v783
    %s941 = sld [smem:[#allocation10 + $0x3c]]
    %v942 = vstv %s941
    %v943 = vadd.f32 %v940, %v942
    %v944 = vmax.f32 %v943, 0.0
    %v945 = vstv %s937
    %v946 = vmul.f32 %v945, %v944
    %s947 = sld [smem:[#allocation12 + $0x3d]]
    %s948 = sld [smem:[#allocation9 + $0x3d]]
    %v949 = vstv %s948
    %v950 = vmul.f32 %v949, %v783
    %s951 = sld [smem:[#allocation10 + $0x3d]]
    %v952 = vstv %s951
    %v953 = vadd.f32 %v950, %v952
    %v954 = vmax.f32 %v953, 0.0
    %v955 = vstv %s947
    %v956 = vmul.f32 %v955, %v954
    %v957 = vadd.f32 %v946, %v956
    %s958 = sld [smem:[#allocation12 + $0x3e]]
    %s959 = sld [smem:[#allocation9 + $0x3e]]
    %v960 = vstv %s959
    %v961 = vmul.f32 %v960, %v783
    %s962 = sld [smem:[#allocation10 + $0x3e]]
    %v963 = vstv %s962
    %v964 = vadd.f32 %v961, %v963
    %v965 = vmax.f32 %v964, 0.0
    %v966 = vstv %s958
    %v967 = vmul.f32 %v966, %v965
    %v968 = vadd.f32 %v957, %v967
    %s969 = sld [smem:[#allocation12 + $0x3f]]
    %s970 = sld [smem:[#allocation9 + $0x3f]]
    %v971 = vstv %s970
    %v972 = vmul.f32 %v971, %v783
    %s973 = sld [smem:[#allocation10 + $0x3f]]
    %v974 = vstv %s973
    %v975 = vadd.f32 %v972, %v974
    %v976 = vmax.f32 %v975, 0.0
    %v977 = vstv %s969
    %v978 = vmul.f32 %v977, %v976
    %v979 = vadd.f32 %v968, %v978
    %v980 = vadd.f32 %v850, %v893
    %v981 = vadd.f32 %v936, %v979
    %v982 = vadd.f32 %v980, %v981
    %v983 = vsub.f32 %v783, %v779
    %v984 = vand.u32 2147483647, %v983
    %v985 = vsub.f32 0.0, %v984
    %v986 = vmul.f32 %v985, 1.442695
    %v987 = vpow.pop %v986
    %v988 = vadd.f32 %v987, 1.0
    %v989 = vrcp.pop %v988
    %vm990 = vcmp.ge.f32.partialorder %v983, 0.0
    %v991 = vmul.f32 %v987, %v989
    %v992 = vsel %vm990, %v989, %v991
    %v993 = vsub.f32 1.0, %v992
    %s994 = ssub.f32 %s807, %s128
    %s995 = smul.f32 %s994, 0.001
    %s996 = sadd.f32 %s806, %s995
    %s997 = sld [smem:[#allocation13 + $0x3]]
    %s998 = ssub.f32 %s997, %s996
    %v999 = vstv %s998
    %v1000 = vadd.f32 %v982, %v999
    %v1001 = vmul.f32 %v130, %v993
    %v1002 = vsub.f32 %v1000, %v1001
    %v1003 = vadd.f32 %v1002, %v779
    %v1004 = vmul.f32 %v1003, 0.5
    %v1005 = vmul.f32 %v131, %v992
    %v1006 = vsub.f32 %v1000, %v1005
    %v1007 = vadd.f32 %v1006, %v783
    %v1008 = vmul.f32 %v1007, 0.5
    %v1009 = vmul.f32 %v1004, %v126
    %1010 = vadd.xlane.f32.xlu0 %v1009
    %v1011 = vpop.xlane.xlu0 %1010
    %v1012 = vrot.slane %v1011, 4
    %v1013 = vadd.f32 %v1011, %v1012
    %v1014 = vrot.slane %v1013, 2
    %v1015 = vadd.f32 %v1013, %v1014
    %v1016 = vrot.slane %v1015, 1
    %v1017 = vadd.f32 %v1015, %v1016
    %s1018 = vtos %v1017
    %v1019 = vmul.f32 %v1008, %v126
    %1020 = vadd.xlane.f32.xlu0 %v1019
    %v1021 = vpop.xlane.xlu0 %1020
    %v1022 = vrot.slane %v1021, 4
    %v1023 = vadd.f32 %v1021, %v1022
    %v1024 = vrot.slane %v1023, 2
    %v1025 = vadd.f32 %v1023, %v1024
    %v1026 = vrot.slane %v1025, 1
    %v1027 = vadd.f32 %v1025, %v1026
    %s1028 = vtos %v1027
    %s1029 = ssub.f32 %s1028, %s128
    %s1030 = smul.f32 %s1029, 0.001
    %s1031 = sadd.f32 %s806, %s1030
    %s1032 = sadd.f32 %s1018, %s1028
    %s1033 = sld [smem:[#allocation12 + $0x40]]
    %s1034 = sld [smem:[#allocation9 + $0x40]]
    %v1035 = vstv %s1034
    %v1036 = vmul.f32 %v1035, %v1008
    %s1037 = sld [smem:[#allocation10 + $0x40]]
    %v1038 = vstv %s1037
    %v1039 = vadd.f32 %v1036, %v1038
    %v1040 = vmax.f32 %v1039, 0.0
    %v1041 = vstv %s1033
    %v1042 = vmul.f32 %v1041, %v1040
    %s1043 = sld [smem:[#allocation12 + $0x41]]
    %s1044 = sld [smem:[#allocation9 + $0x41]]
    %v1045 = vstv %s1044
    %v1046 = vmul.f32 %v1045, %v1008
    %s1047 = sld [smem:[#allocation10 + $0x41]]
    %v1048 = vstv %s1047
    %v1049 = vadd.f32 %v1046, %v1048
    %v1050 = vmax.f32 %v1049, 0.0
    %v1051 = vstv %s1043
    %v1052 = vmul.f32 %v1051, %v1050
    %v1053 = vadd.f32 %v1042, %v1052
    %s1054 = sld [smem:[#allocation12 + $0x42]]
    %s1055 = sld [smem:[#allocation9 + $0x42]]
    %v1056 = vstv %s1055
    %v1057 = vmul.f32 %v1056, %v1008
    %s1058 = sld [smem:[#allocation10 + $0x42]]
    %v1059 = vstv %s1058
    %v1060 = vadd.f32 %v1057, %v1059
    %v1061 = vmax.f32 %v1060, 0.0
    %v1062 = vstv %s1054
    %v1063 = vmul.f32 %v1062, %v1061
    %v1064 = vadd.f32 %v1053, %v1063
    %s1065 = sld [smem:[#allocation12 + $0x43]]
    %s1066 = sld [smem:[#allocation9 + $0x43]]
    %v1067 = vstv %s1066
    %v1068 = vmul.f32 %v1067, %v1008
    %s1069 = sld [smem:[#allocation10 + $0x43]]
    %v1070 = vstv %s1069
    %v1071 = vadd.f32 %v1068, %v1070
    %v1072 = vmax.f32 %v1071, 0.0
    %v1073 = vstv %s1065
    %v1074 = vmul.f32 %v1073, %v1072
    %v1075 = vadd.f32 %v1064, %v1074
    %s1076 = sld [smem:[#allocation12 + $0x44]]
    %s1077 = sld [smem:[#allocation9 + $0x44]]
    %v1078 = vstv %s1077
    %v1079 = vmul.f32 %v1078, %v1008
    %s1080 = sld [smem:[#allocation10 + $0x44]]
    %v1081 = vstv %s1080
    %v1082 = vadd.f32 %v1079, %v1081
    %v1083 = vmax.f32 %v1082, 0.0
    %v1084 = vstv %s1076
    %v1085 = vmul.f32 %v1084, %v1083
    %s1086 = sld [smem:[#allocation12 + $0x45]]
    %s1087 = sld [smem:[#allocation9 + $0x45]]
    %v1088 = vstv %s1087
    %v1089 = vmul.f32 %v1088, %v1008
    %s1090 = sld [smem:[#allocation10 + $0x45]]
    %v1091 = vstv %s1090
    %v1092 = vadd.f32 %v1089, %v1091
    %v1093 = vmax.f32 %v1092, 0.0
    %v1094 = vstv %s1086
    %v1095 = vmul.f32 %v1094, %v1093
    %v1096 = vadd.f32 %v1085, %v1095
    %s1097 = sld [smem:[#allocation12 + $0x46]]
    %s1098 = sld [smem:[#allocation9 + $0x46]]
    %v1099 = vstv %s1098
    %v1100 = vmul.f32 %v1099, %v1008
    %s1101 = sld [smem:[#allocation10 + $0x46]]
    %v1102 = vstv %s1101
    %v1103 = vadd.f32 %v1100, %v1102
    %v1104 = vmax.f32 %v1103, 0.0
    %v1105 = vstv %s1097
    %v1106 = vmul.f32 %v1105, %v1104
    %v1107 = vadd.f32 %v1096, %v1106
    %s1108 = sld [smem:[#allocation12 + $0x47]]
    %s1109 = sld [smem:[#allocation9 + $0x47]]
    %v1110 = vstv %s1109
    %v1111 = vmul.f32 %v1110, %v1008
    %s1112 = sld [smem:[#allocation10 + $0x47]]
    %v1113 = vstv %s1112
    %v1114 = vadd.f32 %v1111, %v1113
    %v1115 = vmax.f32 %v1114, 0.0
    %v1116 = vstv %s1108
    %v1117 = vmul.f32 %v1116, %v1115
    %v1118 = vadd.f32 %v1107, %v1117
    %s1119 = sld [smem:[#allocation12 + $0x48]]
    %s1120 = sld [smem:[#allocation9 + $0x48]]
    %v1121 = vstv %s1120
    %v1122 = vmul.f32 %v1121, %v1008
    %s1123 = sld [smem:[#allocation10 + $0x48]]
    %v1124 = vstv %s1123
    %v1125 = vadd.f32 %v1122, %v1124
    %v1126 = vmax.f32 %v1125, 0.0
    %v1127 = vstv %s1119
    %v1128 = vmul.f32 %v1127, %v1126
    %s1129 = sld [smem:[#allocation12 + $0x49]]
    %s1130 = sld [smem:[#allocation9 + $0x49]]
    %v1131 = vstv %s1130
    %v1132 = vmul.f32 %v1131, %v1008
    %s1133 = sld [smem:[#allocation10 + $0x49]]
    %v1134 = vstv %s1133
    %v1135 = vadd.f32 %v1132, %v1134
    %v1136 = vmax.f32 %v1135, 0.0
    %v1137 = vstv %s1129
    %v1138 = vmul.f32 %v1137, %v1136
    %v1139 = vadd.f32 %v1128, %v1138
    %s1140 = sld [smem:[#allocation12 + $0x4a]]
    %s1141 = sld [smem:[#allocation9 + $0x4a]]
    %v1142 = vstv %s1141
    %v1143 = vmul.f32 %v1142, %v1008
    %s1144 = sld [smem:[#allocation10 + $0x4a]]
    %v1145 = vstv %s1144
    %v1146 = vadd.f32 %v1143, %v1145
    %v1147 = vmax.f32 %v1146, 0.0
    %v1148 = vstv %s1140
    %v1149 = vmul.f32 %v1148, %v1147
    %v1150 = vadd.f32 %v1139, %v1149
    %s1151 = sld [smem:[#allocation12 + $0x4b]]
    %s1152 = sld [smem:[#allocation9 + $0x4b]]
    %v1153 = vstv %s1152
    %v1154 = vmul.f32 %v1153, %v1008
    %s1155 = sld [smem:[#allocation10 + $0x4b]]
    %v1156 = vstv %s1155
    %v1157 = vadd.f32 %v1154, %v1156
    %v1158 = vmax.f32 %v1157, 0.0
    %v1159 = vstv %s1151
    %v1160 = vmul.f32 %v1159, %v1158
    %v1161 = vadd.f32 %v1150, %v1160
    %s1162 = sld [smem:[#allocation12 + $0x4c]]
    %s1163 = sld [smem:[#allocation9 + $0x4c]]
    %v1164 = vstv %s1163
    %v1165 = vmul.f32 %v1164, %v1008
    %s1166 = sld [smem:[#allocation10 + $0x4c]]
    %v1167 = vstv %s1166
    %v1168 = vadd.f32 %v1165, %v1167
    %v1169 = vmax.f32 %v1168, 0.0
    %v1170 = vstv %s1162
    %v1171 = vmul.f32 %v1170, %v1169
    %s1172 = sld [smem:[#allocation12 + $0x4d]]
    %s1173 = sld [smem:[#allocation9 + $0x4d]]
    %v1174 = vstv %s1173
    %v1175 = vmul.f32 %v1174, %v1008
    %s1176 = sld [smem:[#allocation10 + $0x4d]]
    %v1177 = vstv %s1176
    %v1178 = vadd.f32 %v1175, %v1177
    %v1179 = vmax.f32 %v1178, 0.0
    %v1180 = vstv %s1172
    %v1181 = vmul.f32 %v1180, %v1179
    %v1182 = vadd.f32 %v1171, %v1181
    %s1183 = sld [smem:[#allocation12 + $0x4e]]
    %s1184 = sld [smem:[#allocation9 + $0x4e]]
    %v1185 = vstv %s1184
    %v1186 = vmul.f32 %v1185, %v1008
    %s1187 = sld [smem:[#allocation10 + $0x4e]]
    %v1188 = vstv %s1187
    %v1189 = vadd.f32 %v1186, %v1188
    %v1190 = vmax.f32 %v1189, 0.0
    %v1191 = vstv %s1183
    %v1192 = vmul.f32 %v1191, %v1190
    %v1193 = vadd.f32 %v1182, %v1192
    %s1194 = sld [smem:[#allocation12 + $0x4f]]
    %s1195 = sld [smem:[#allocation9 + $0x4f]]
    %v1196 = vstv %s1195
    %v1197 = vmul.f32 %v1196, %v1008
    %s1198 = sld [smem:[#allocation10 + $0x4f]]
    %v1199 = vstv %s1198
    %v1200 = vadd.f32 %v1197, %v1199
    %v1201 = vmax.f32 %v1200, 0.0
    %v1202 = vstv %s1194
    %v1203 = vmul.f32 %v1202, %v1201
    %v1204 = vadd.f32 %v1193, %v1203
    %v1205 = vadd.f32 %v1075, %v1118
    %v1206 = vadd.f32 %v1161, %v1204
    %v1207 = vadd.f32 %v1205, %v1206
    %v1208 = vsub.f32 %v1008, %v1004
    %v1209 = vand.u32 2147483647, %v1208
    %v1210 = vsub.f32 0.0, %v1209
    %v1211 = vmul.f32 %v1210, 1.442695
    %v1212 = vpow.pop %v1211
    %v1213 = vadd.f32 %v1212, 1.0
    %v1214 = vrcp.pop %v1213
    %vm1215 = vcmp.ge.f32.partialorder %v1208, 0.0
    %v1216 = vmul.f32 %v1212, %v1214
    %v1217 = vsel %vm1215, %v1214, %v1216
    %v1218 = vsub.f32 1.0, %v1217
    %s1219 = ssub.f32 %s1032, %s128
    %s1220 = smul.f32 %s1219, 0.001
    %s1221 = sadd.f32 %s1031, %s1220
    %s1222 = sld [smem:[#allocation13 + $0x4]]
    %s1223 = ssub.f32 %s1222, %s1221
    %v1224 = vstv %s1223
    %v1225 = vadd.f32 %v1207, %v1224
    %v1226 = vmul.f32 %v130, %v1218
    %v1227 = vsub.f32 %v1225, %v1226
    %v1228 = vadd.f32 %v1227, %v1004
    %v1229 = vmul.f32 %v1228, 0.5
    %v1230 = vmul.f32 %v131, %v1217
    %v1231 = vsub.f32 %v1225, %v1230
    %v1232 = vadd.f32 %v1231, %v1008
    %v1233 = vmul.f32 %v1232, 0.5
    %1234 = vst [vmem:[#allocation16] sm:$0xff] %v1229
    %s1235 = scalar_lea.vmem [#allocation16], 8
    %1236 = vst [vmem:[%s1235] sm:$0xff] %v1233
    // Predicated region
    $region66: #{tpu_custom_call.1} parent=1 // pred_check
      _
    $region67: #{tpu_custom_call.1} parent=1 // pred_check_branch
      %1238 = sbr.rel (0) target = $region69
    $region68: #{tpu_custom_call.1} parent=1 // pred_region
      %s1240 = ssub.s32 256, 256
      %1241 = vsyncadd [#allocation4], %s1240
      %s1242 = sshll.u32 [#allocation16], 4
      %s1243 = int_to_ptr.vmem [resolvable:$true] %s1242
      %1248 = dma.vmem_to_hbm [thread:$0]  %s1243, 256, %s8, [#allocation4], 128, 128, 8
    $region69: #{tpu_custom_call.1} parent=1 // pred_fallthru
      _
    // Predicated region
    $region70: #{tpu_custom_call.1} parent=1 // pred_check
      _
    $region71: #{tpu_custom_call.1} parent=1 // pred_check_branch
      %1250 = sbr.rel (0) target = $region73
    $region72: #{tpu_custom_call.1} parent=1 // pred_region
      %1251 = dma.done [#allocation4], 256
    $region73: #{tpu_custom_call.1} parent=1 // pred_fallthru
      _
    %1252 = vsyncpa [#allocation3], 1
    %1253 = vsyncpa [#allocation7], 1
    %1254 = vsyncpa [#allocation4], 1
    %1255 = vsyncpa [#allocation5], 1
    %1256 = vsyncpa [#allocation11], 1
    %1257 = vsyncpa [#allocation14], 1

</llo_original>
